<compile_context>
chip_gen: v7x
topology: tpu7x:2x2x1
jax: 0.10.0
libtpu: 0.0.40
codegen_flags: <defaults>
</compile_context>

<pallas_src>
import jax
import jax.numpy as jnp
from jax.experimental import pallas as pl
from jax.experimental.pallas import tpu as pltpu


def _mlp_softmax_kernel(x_ref, w1_ref, b1_ref, w2_ref, b2_ref, w3_ref, b3_ref,
                        o_ref):
    # In-kernel cast of the x tile to the matmul dtype (bf16 or f32).
    x = x_ref[...].astype(w1_ref.dtype)

    # Layer 1: Linear (MXU, f32 accumulate) + bias + ReLU in f32.
    h1 = jnp.dot(x, w1_ref[...], preferred_element_type=jnp.float32)
    h1 = jnp.maximum(h1 + b1_ref[...], 0.0)

    # Layer 2: Linear + ReLU.
    h2 = jnp.dot(h1.astype(w2_ref.dtype), w2_ref[...],
                 preferred_element_type=jnp.float32)
    h2 = jnp.maximum(h2 + b2_ref[...], 0.0)

    # Output layer: Linear at the natural class width (no lane padding).
    logits = jnp.dot(h2.astype(w3_ref.dtype), w3_ref[...],
                     preferred_element_type=jnp.float32)
    logits = logits + b3_ref[...]

    # Numerically stable softmax over the class axis, exact normalization.
    m = jnp.max(logits, axis=-1, keepdims=True)
    e = jnp.exp(logits - m)
    denom = jnp.sum(e, axis=-1, keepdims=True)
    o_ref[...] = (e / denom).astype(o_ref.dtype)


def prepare_params(params, *, use_bf16=True):
    """One-time parameter prep (dtype casts) hoisted out of the forward."""
    mm_dtype = jnp.bfloat16 if use_bf16 else jnp.float32
    return dict(
        w1=params["w1"].astype(mm_dtype),
        w2=params["w2"].astype(mm_dtype),
        w3=params["w3"].astype(mm_dtype),
        b1=params["b1"].astype(jnp.float32),
        b2=params["b2"].astype(jnp.float32),
        b3=params["b3"].astype(jnp.float32),
    )


def _num_tensorcores():
    """Best-effort core count of the first device (v7x has 2 TCs/chip)."""
    try:
        d = jax.devices()[0]
        n = getattr(d, "num_cores", None)
        return int(n) if n else 1
    except Exception:  # pragma: no cover - defensive
        return 1


def _default_batch_tile(n_rows, num_cores, cap=2048):
    """One tile per core (rounded up to 128 rows), capped for huge batches."""
    per_core = -(-n_rows // max(1, num_cores))          # ceil
    tile = ((per_core + 127) // 128) * 128               # round up to 128
    return max(128, min(tile, cap))


def point_classifier_forward(x, prepared, *, batch_tile=None):
    """x: (N, input_dim) f32.  prepared: output of prepare_params().

    Returns softmax probabilities, shape (N, output_dim), f32.
    """
    w1, b1 = prepared["w1"], prepared["b1"]
    w2, b2 = prepared["w2"], prepared["b2"]
    w3, b3 = prepared["w3"], prepared["b3"]

    N, d_in = x.shape
    h1 = w1.shape[1]
    h2 = w2.shape[1]
    d_out = w3.shape[1]

    if batch_tile is None:
        batch_tile = _default_batch_tile(N, _num_tensorcores())
    assert batch_tile % 8 == 0, "batch_tile must be a multiple of 8"

    grid = (pl.cdiv(N, batch_tile),)   # ragged last block clipped by Pallas

    flops = 2 * N * (d_in * h1 + h1 * h2 + h2 * d_out)
    bytes_accessed = (x.size * x.dtype.itemsize
                      + w1.size * w1.dtype.itemsize
                      + w2.size * w2.dtype.itemsize
                      + w3.size * w3.dtype.itemsize
                      + (b1.size + b2.size + b3.size) * 4
                      + N * d_out * 4)

    out = pl.pallas_call(
        _mlp_softmax_kernel,
        out_shape=jax.ShapeDtypeStruct((N, d_out), jnp.float32),
        grid_spec=pl.GridSpec(
            grid=grid,
            in_specs=[
                pl.BlockSpec((batch_tile, d_in), lambda i: (i, 0)),  # x tile
                pl.BlockSpec((d_in, h1), lambda i: (0, 0)),          # w1 (resident)
                pl.BlockSpec((1, h1), lambda i: (0, 0)),             # b1
                pl.BlockSpec((h1, h2), lambda i: (0, 0)),            # w2
                pl.BlockSpec((1, h2), lambda i: (0, 0)),             # b2
                pl.BlockSpec((h2, d_out), lambda i: (0, 0)),         # w3
                pl.BlockSpec((1, d_out), lambda i: (0, 0)),          # b3
            ],
            out_specs=pl.BlockSpec((batch_tile, d_out), lambda i: (i, 0)),
        ),
        compiler_params=pltpu.CompilerParams(
            dimension_semantics=("parallel",)),
        cost_estimate=pl.CostEstimate(
            flops=flops,
            transcendentals=N * d_out,
            bytes_accessed=bytes_accessed),
    )(x, w1, b1, w2, b2, w3, b3)

    return out


def init_params(key, d_in, h1, h2, d_out):
    """Deterministic synthetic init (Kaiming-uniform-ish like nn.Linear)."""
    ks = jax.random.split(key, 6)

    def linear(kw, kb, fan_in, fan_out):
        bound = 1.0 / jnp.sqrt(fan_in)
        w = jax.random.uniform(kw, (fan_in, fan_out), jnp.float32,
                               minval=-bound, maxval=bound)
        b = jax.random.uniform(kb, (1, fan_out), jnp.float32,
                               minval=-bound, maxval=bound)
        return w, b

    w1, b1 = linear(ks[0], ks[1], d_in, h1)
    w2, b2 = linear(ks[2], ks[3], h1, h2)
    w3, b3 = linear(ks[4], ks[5], h2, d_out)
    return dict(w1=w1, b1=b1, w2=w2, b2=b2, w3=w3, b3=b3)


def reference_forward_f32(x, p):
    h = jnp.maximum(x @ p["w1"] + p["b1"], 0.0)
    h = jnp.maximum(h @ p["w2"] + p["b2"], 0.0)
    logits = h @ p["w3"] + p["b3"]
    return jax.nn.softmax(logits, axis=1)


def reference_forward_mixed(x, p):
    """Mirrors the kernel's precision: bf16 matmul inputs, f32 accumulate."""
    bf = jnp.bfloat16
    h = jnp.maximum(
        jnp.dot(x.astype(bf), p["w1"].astype(bf),
                preferred_element_type=jnp.float32) + p["b1"], 0.0)
    h = jnp.maximum(
        jnp.dot(h.astype(bf), p["w2"].astype(bf),
                preferred_element_type=jnp.float32) + p["b2"], 0.0)
    logits = jnp.dot(h.astype(bf), p["w3"].astype(bf),
                     preferred_element_type=jnp.float32) + p["b3"]
    return jax.nn.softmax(logits, axis=1)


if __name__ == "__main__":
    # Module's forward: X is (N, 256).
    N, D_IN, H1, H2, D_OUT = 512, 256, 64, 32, 8

    key = jax.random.PRNGKey(0)
    kx, kp = jax.random.split(key)
    x = jax.random.normal(kx, (N, D_IN), jnp.float32)
    params = init_params(kp, D_IN, H1, H2, D_OUT)

    # One-time weight prep (kept out of the per-call path).
    prepared = prepare_params(params, use_bf16=True)

    out = point_classifier_forward(x, prepared)
    out = jax.block_until_ready(out)

    assert out.shape == (N, D_OUT)

    # Tight check against a reference that mirrors the kernel's mixed precision.
    ref_mixed = reference_forward_mixed(x, params)
    assert jnp.allclose(out, ref_mixed, atol=2e-3, rtol=1e-3), \
        "mismatch vs mixed-precision reference"

    # Looser check against the full-f32 PyTorch-equivalent math.
    ref_f32 = reference_forward_f32(x, params)
    assert jnp.allclose(out, ref_f32, atol=2e-2), "mismatch vs f32 reference"

    # Softmax rows must sum to ~1 (exact divide -> tight tolerance).
    assert jnp.allclose(jnp.sum(out, axis=1), 1.0, atol=1e-5), \
        "softmax rows must sum to 1"

    # Also exercise the f32 escape hatch and a multi-tile grid once.
    prepared_f32 = prepare_params(params, use_bf16=False)
    out_f32 = jax.block_until_ready(
        point_classifier_forward(x, prepared_f32, batch_tile=256))
    assert jnp.allclose(out_f32, ref_f32, atol=2e-5), \
        "f32 path mismatch vs f32 reference"

    print("KERNEL_OK")
</pallas_src>

<mosaic_0001>
module attributes {stable_mosaic.version = 11 : i64} {
  func.func @_mlp_softmax_kernel(%arg0: i32, %arg1: memref<512x256xf32, #tpu.memory_space<vmem>>, %arg2: memref<256x64xbf16, #tpu.memory_space<vmem>>, %arg3: memref<1x64xf32, #tpu.memory_space<vmem>>, %arg4: memref<64x32xbf16, #tpu.memory_space<vmem>>, %arg5: memref<1x32xf32, #tpu.memory_space<vmem>>, %arg6: memref<32x8xbf16, #tpu.memory_space<vmem>>, %arg7: memref<1x8xf32, #tpu.memory_space<vmem>>, %arg8: memref<512x8xf32, #tpu.memory_space<vmem>>) attributes {dimension_semantics = [#tpu.dimension_semantics<parallel>], iteration_bounds = array<i64: 1>, scalar_prefetch = 0 : i64, scratch_operands = 0 : i64, tpu.core_type = #tpu.core_type<tc>, window_params = [{transform_indices = @transform_0, window_bounds = array<i64: 512, 256>}, {pipeline_mode = #tpu.pipeline_mode<synchronous>, transform_indices = @transform_1, window_bounds = array<i64: 256, 64>}, {pipeline_mode = #tpu.pipeline_mode<synchronous>, transform_indices = @transform_2, window_bounds = array<i64: 1, 64>}, {pipeline_mode = #tpu.pipeline_mode<synchronous>, transform_indices = @transform_3, window_bounds = array<i64: 64, 32>}, {pipeline_mode = #tpu.pipeline_mode<synchronous>, transform_indices = @transform_4, window_bounds = array<i64: 1, 32>}, {pipeline_mode = #tpu.pipeline_mode<synchronous>, transform_indices = @transform_5, window_bounds = array<i64: 32, 8>}, {pipeline_mode = #tpu.pipeline_mode<synchronous>, transform_indices = @transform_6, window_bounds = array<i64: 1, 8>}, {transform_indices = @transform_7, window_bounds = array<i64: 512, 8>}]} {
    %c0 = arith.constant 0 : index
    %c0_0 = arith.constant 0 : index
    %0 = vector.load %arg1[%c0, %c0_0] : memref<512x256xf32, #tpu.memory_space<vmem>>, vector<512x256xf32>
    %1 = arith.truncf %0 : vector<512x256xf32> to vector<512x256xbf16>
    %c0_1 = arith.constant 0 : index
    %c0_2 = arith.constant 0 : index
    %2 = vector.load %arg2[%c0_1, %c0_2] : memref<256x64xbf16, #tpu.memory_space<vmem>>, vector<256x64xbf16>
    %cst = arith.constant dense<0.000000e+00> : vector<512x64xf32>
    %3 = tpu.matmul %1, %2, %cst {dimension_numbers = #tpu.dot_dimension_numbers<[1], [0], [0], [1], [0, 0, 1, 1], [], []>} : vector<512x256xbf16>, vector<256x64xbf16>, vector<512x64xf32> -> vector<512x64xf32>
    %c0_3 = arith.constant 0 : index
    %c0_4 = arith.constant 0 : index
    %4 = vector.load %arg3[%c0_3, %c0_4] : memref<1x64xf32, #tpu.memory_space<vmem>>, vector<1x64xf32>
    %5 = vector.broadcast %4 : vector<1x64xf32> to vector<512x64xf32>
    %6 = arith.addf %3, %5 : vector<512x64xf32>
    %cst_5 = arith.constant 0.000000e+00 : f32
    %7 = vector.broadcast %cst_5 : f32 to vector<512x64xf32>
    %8 = arith.maximumf %6, %7 : vector<512x64xf32>
    %9 = arith.truncf %8 : vector<512x64xf32> to vector<512x64xbf16>
    %c0_6 = arith.constant 0 : index
    %c0_7 = arith.constant 0 : index
    %10 = vector.load %arg4[%c0_6, %c0_7] : memref<64x32xbf16, #tpu.memory_space<vmem>>, vector<64x32xbf16>
    %cst_8 = arith.constant dense<0.000000e+00> : vector<512x32xf32>
    %11 = tpu.matmul %9, %10, %cst_8 {dimension_numbers = #tpu.dot_dimension_numbers<[1], [0], [0], [1], [0, 0, 1, 1], [], []>} : vector<512x64xbf16>, vector<64x32xbf16>, vector<512x32xf32> -> vector<512x32xf32>
    %c0_9 = arith.constant 0 : index
    %c0_10 = arith.constant 0 : index
    %12 = vector.load %arg5[%c0_9, %c0_10] : memref<1x32xf32, #tpu.memory_space<vmem>>, vector<1x32xf32>
    %13 = vector.broadcast %12 : vector<1x32xf32> to vector<512x32xf32>
    %14 = arith.addf %11, %13 : vector<512x32xf32>
    %cst_11 = arith.constant 0.000000e+00 : f32
    %15 = vector.broadcast %cst_11 : f32 to vector<512x32xf32>
    %16 = arith.maximumf %14, %15 : vector<512x32xf32>
    %17 = arith.truncf %16 : vector<512x32xf32> to vector<512x32xbf16>
    %c0_12 = arith.constant 0 : index
    %c0_13 = arith.constant 0 : index
    %18 = vector.load %arg6[%c0_12, %c0_13] : memref<32x8xbf16, #tpu.memory_space<vmem>>, vector<32x8xbf16>
    %cst_14 = arith.constant dense<0.000000e+00> : vector<512x8xf32>
    %19 = tpu.matmul %17, %18, %cst_14 {dimension_numbers = #tpu.dot_dimension_numbers<[1], [0], [0], [1], [0, 0, 1, 1], [], []>} : vector<512x32xbf16>, vector<32x8xbf16>, vector<512x8xf32> -> vector<512x8xf32>
    %c0_15 = arith.constant 0 : index
    %c0_16 = arith.constant 0 : index
    %20 = vector.load %arg7[%c0_15, %c0_16] : memref<1x8xf32, #tpu.memory_space<vmem>>, vector<1x8xf32>
    %21 = vector.broadcast %20 : vector<1x8xf32> to vector<512x8xf32>
    %22 = arith.addf %19, %21 : vector<512x8xf32>
    %cst_17 = arith.constant dense<0xFF800000> : vector<512xf32>
    %23 = vector.multi_reduction <maximumf>, %22, %cst_17 [1] : vector<512x8xf32> to vector<512xf32>
    %24 = vector.shape_cast %23 : vector<512xf32> to vector<512x1xf32>
    %25 = vector.broadcast %24 : vector<512x1xf32> to vector<512x8xf32>
    %26 = arith.subf %22, %25 : vector<512x8xf32>
    %27 = math.exp %26 : vector<512x8xf32>
    %cst_18 = arith.constant dense<0.000000e+00> : vector<512xf32>
    %28 = vector.multi_reduction <add>, %27, %cst_18 [1] : vector<512x8xf32> to vector<512xf32>
    %29 = vector.shape_cast %28 : vector<512xf32> to vector<512x1xf32>
    %30 = vector.broadcast %29 : vector<512x1xf32> to vector<512x8xf32>
    %31 = arith.divf %27, %30 : vector<512x8xf32>
    %c0_19 = arith.constant 0 : index
    %c0_20 = arith.constant 0 : index
    %32 = vector.load %arg8[%c0_19, %c0_20] : memref<512x8xf32, #tpu.memory_space<vmem>>, vector<512x8xf32>
    tpu.vector_store %arg8[%c0_19, %c0_20], %31 {strides = array<i32>} : memref<512x8xf32, #tpu.memory_space<vmem>>, vector<512x8xf32>,
    return
  }
  func.func @transform_0(%arg0: i32) -> (i32, i32) {
    %c0_i32 = arith.constant 0 : i32
    %c0_i32_0 = arith.constant 0 : i32
    return %arg0, %c0_i32 : i32, i32
  }
  func.func @transform_1(%arg0: i32) -> (i32, i32) {
    %c0_i32 = arith.constant 0 : i32
    %c0_i32_0 = arith.constant 0 : i32
    %c0_i32_1 = arith.constant 0 : i32
    return %c0_i32, %c0_i32_0 : i32, i32
  }
  func.func @transform_2(%arg0: i32) -> (i32, i32) {
    %c0_i32 = arith.constant 0 : i32
    %c0_i32_0 = arith.constant 0 : i32
    %c0_i32_1 = arith.constant 0 : i32
    return %c0_i32, %c0_i32_0 : i32, i32
  }
  func.func @transform_3(%arg0: i32) -> (i32, i32) {
    %c0_i32 = arith.constant 0 : i32
    %c0_i32_0 = arith.constant 0 : i32
    %c0_i32_1 = arith.constant 0 : i32
    return %c0_i32, %c0_i32_0 : i32, i32
  }
  func.func @transform_4(%arg0: i32) -> (i32, i32) {
    %c0_i32 = arith.constant 0 : i32
    %c0_i32_0 = arith.constant 0 : i32
    %c0_i32_1 = arith.constant 0 : i32
    return %c0_i32, %c0_i32_0 : i32, i32
  }
  func.func @transform_5(%arg0: i32) -> (i32, i32) {
    %c0_i32 = arith.constant 0 : i32
    %c0_i32_0 = arith.constant 0 : i32
    %c0_i32_1 = arith.constant 0 : i32
    return %c0_i32, %c0_i32_0 : i32, i32
  }
  func.func @transform_6(%arg0: i32) -> (i32, i32) {
    %c0_i32 = arith.constant 0 : i32
    %c0_i32_0 = arith.constant 0 : i32
    %c0_i32_1 = arith.constant 0 : i32
    return %c0_i32, %c0_i32_0 : i32, i32
  }
  func.func @transform_7(%arg0: i32) -> (i32, i32) {
    %c0_i32 = arith.constant 0 : i32
    %c0_i32_0 = arith.constant 0 : i32
    return %arg0, %c0_i32 : i32, i32
  }
}

</mosaic_0001>

<llo_original>
// kernel: tpu_custom_call.1
$region0: #{tpu_custom_call.1}
  #allocation0 [shape = 'u32[]', space=smem, size = 0x4, offset = 0x4, fixed_abs, tag = 'smem constant byte address 0x4 - core index']
  #allocation1 [shape = 'u32[144,128]{1,0:T(1,128)}', space=vmem, size = 0x12000, scoped, tag = 'internal scratch']
  %s0 = inlined_call_operand.hbm [shape: f32[512,256], index: 0, kind: input, shape index: {}]
  %s1 = inlined_call_operand.vmem [shape: bf16[256,64], index: 1, kind: input, shape index: {}]
  %s2 = inlined_call_operand.vmem [shape: f32[1,64], index: 2, kind: input, shape index: {}]
  %s3 = inlined_call_operand.vmem [shape: bf16[64,32], index: 3, kind: input, shape index: {}]
  %s4 = inlined_call_operand.vmem [shape: f32[1,32], index: 4, kind: input, shape index: {}]
  %s5 = inlined_call_operand.vmem [shape: bf16[32,8], index: 5, kind: input, shape index: {}]
  %s6 = inlined_call_operand.vmem [shape: f32[1,8], index: 6, kind: input, shape index: {}]
  %s7 = inlined_call_operand.vmem [shape: f32[512,8], index: 7, kind: output, shape index: {}]
  %s8 = sld [smem:[#allocation0]]
  $region42: #{tpu_custom_call.1} parent=0
    _
  %s10 = ssub.s32 1, %s8
  %s11 = scalar_select 0, %s10, %s8
  $region1: #{tpu_custom_call.1} parent=0
    #allocation2 [shape = 'u8[524288]{0}', space=vmem, size = 0x80000, scoped, tag = 'input window, operand 0, single buffered']
    #allocation3 [shape = 's32[1]{0}', space=sflag, size = 0x4, scoped, tag = 'scoped memory for tpu_custom_call.1']
    %12 = vsyncpa [#allocation3], 0
    // Predicated region
    $region2: #{tpu_custom_call.1} parent=1 // pred_check
      _
    $region3: #{tpu_custom_call.1} parent=1 // pred_check_branch
      %14 = sbr.rel (0) target = $region5
    $region4: #{tpu_custom_call.1} parent=1 // pred_region
      %s16 = ssub.s32 16384, 16384
      %17 = vsyncadd [#allocation3], %s16
      %s18 = sshll.u32 [#allocation2], 4
      %s19 = int_to_ptr.vmem [resolvable:$true] %s18
      %24 = dma.hbm_to_vmem [thread:$0]  %s0, 16384, %s19, [#allocation3], 256, 256, 16
    $region5: #{tpu_custom_call.1} parent=1 // pred_fallthru
      _
    // Predicated region
    $region6: #{tpu_custom_call.1} parent=1 // pred_check
      _
    $region7: #{tpu_custom_call.1} parent=1 // pred_check_branch
      %26 = sbr.rel (0) target = $region9
    $region8: #{tpu_custom_call.1} parent=1 // pred_region
      _
    $region9: #{tpu_custom_call.1} parent=1 // pred_fallthru
      _
    // Predicated region
    $region10: #{tpu_custom_call.1} parent=1 // pred_check
      _
    $region11: #{tpu_custom_call.1} parent=1 // pred_check_branch
      %28 = sbr.rel (0) target = $region13
    $region12: #{tpu_custom_call.1} parent=1 // pred_region
      _
    $region13: #{tpu_custom_call.1} parent=1 // pred_fallthru
      _
    // Predicated region
    $region14: #{tpu_custom_call.1} parent=1 // pred_check
      _
    $region15: #{tpu_custom_call.1} parent=1 // pred_check_branch
      %30 = sbr.rel (0) target = $region17
    $region16: #{tpu_custom_call.1} parent=1 // pred_region
      _
    $region17: #{tpu_custom_call.1} parent=1 // pred_fallthru
      _
    // Predicated region
    $region18: #{tpu_custom_call.1} parent=1 // pred_check
      _
    $region19: #{tpu_custom_call.1} parent=1 // pred_check_branch
      %32 = sbr.rel (0) target = $region21
    $region20: #{tpu_custom_call.1} parent=1 // pred_region
      _
    $region21: #{tpu_custom_call.1} parent=1 // pred_fallthru
      _
    // Predicated region
    $region22: #{tpu_custom_call.1} parent=1 // pred_check
      _
    $region23: #{tpu_custom_call.1} parent=1 // pred_check_branch
      %34 = sbr.rel (0) target = $region25
    $region24: #{tpu_custom_call.1} parent=1 // pred_region
      _
    $region25: #{tpu_custom_call.1} parent=1 // pred_fallthru
      _
    // Predicated region
    $region26: #{tpu_custom_call.1} parent=1 // pred_check
      _
    $region27: #{tpu_custom_call.1} parent=1 // pred_check_branch
      %36 = sbr.rel (0) target = $region29
    $region28: #{tpu_custom_call.1} parent=1 // pred_region
      _
    $region29: #{tpu_custom_call.1} parent=1 // pred_fallthru
      _
    // Predicated region
    $region30: #{tpu_custom_call.1} parent=1 // pred_check
      _
    $region31: #{tpu_custom_call.1} parent=1 // pred_check_branch
      %38 = sbr.rel (0) target = $region33
    $region32: #{tpu_custom_call.1} parent=1 // pred_region
      %39 = dma.done [#allocation3], 16384
    $region33: #{tpu_custom_call.1} parent=1 // pred_fallthru
      _
    %v41 = vld [vmem:[#allocation2] sm:$0xff]
    %v42 = vld [vmem:[#allocation2 + $0x8] sm:$0xff]
    %v43 = vld [vmem:[#allocation2 + $0x10] sm:$0xff]
    %v44 = vld [vmem:[#allocation2 + $0x18] sm:$0xff]
    %v45 = vld [vmem:[#allocation2 + $0x20] sm:$0xff]
    %v46 = vld [vmem:[#allocation2 + $0x28] sm:$0xff]
    %v47 = vld [vmem:[#allocation2 + $0x30] sm:$0xff]
    %v48 = vld [vmem:[#allocation2 + $0x38] sm:$0xff]
    %v49 = vld [vmem:[#allocation2 + $0x40] sm:$0xff]
    %v50 = vld [vmem:[#allocation2 + $0x48] sm:$0xff]
    %v51 = vld [vmem:[#allocation2 + $0x50] sm:$0xff]
    %v52 = vld [vmem:[#allocation2 + $0x58] sm:$0xff]
    %v53 = vld [vmem:[#allocation2 + $0x60] sm:$0xff]
    %v54 = vld [vmem:[#allocation2 + $0x68] sm:$0xff]
    %v55 = vld [vmem:[#allocation2 + $0x70] sm:$0xff]
    %v56 = vld [vmem:[#allocation2 + $0x78] sm:$0xff]
    %v57 = vld [vmem:[#allocation2 + $0x80] sm:$0xff]
    %v58 = vld [vmem:[#allocation2 + $0x88] sm:$0xff]
    %v59 = vld [vmem:[#allocation2 + $0x90] sm:$0xff]
    %v60 = vld [vmem:[#allocation2 + $0x98] sm:$0xff]
    %v61 = vld [vmem:[#allocation2 + $0xa0] sm:$0xff]
    %v62 = vld [vmem:[#allocation2 + $0xa8] sm:$0xff]
    %v63 = vld [vmem:[#allocation2 + $0xb0] sm:$0xff]
    %v64 = vld [vmem:[#allocation2 + $0xb8] sm:$0xff]
    %v65 = vld [vmem:[#allocation2 + $0xc0] sm:$0xff]
    %v66 = vld [vmem:[#allocation2 + $0xc8] sm:$0xff]
    %v67 = vld [vmem:[#allocation2 + $0xd0] sm:$0xff]
    %v68 = vld [vmem:[#allocation2 + $0xd8] sm:$0xff]
    %v69 = vld [vmem:[#allocation2 + $0xe0] sm:$0xff]
    %v70 = vld [vmem:[#allocation2 + $0xe8] sm:$0xff]
    %v71 = vld [vmem:[#allocation2 + $0xf0] sm:$0xff]
    %v72 = vld [vmem:[#allocation2 + $0xf8] sm:$0xff]
    %v73 = vld [vmem:[#allocation2 + $0x100] sm:$0xff]
    %v74 = vld [vmem:[#allocation2 + $0x108] sm:$0xff]
    %v75 = vld [vmem:[#allocation2 + $0x110] sm:$0xff]
    %v76 = vld [vmem:[#allocation2 + $0x118] sm:$0xff]
    %v77 = vld [vmem:[#allocation2 + $0x120] sm:$0xff]
    %v78 = vld [vmem:[#allocation2 + $0x128] sm:$0xff]
    %v79 = vld [vmem:[#allocation2 + $0x130] sm:$0xff]
    %v80 = vld [vmem:[#allocation2 + $0x138] sm:$0xff]
    %v81 = vld [vmem:[#allocation2 + $0x140] sm:$0xff]
    %v82 = vld [vmem:[#allocation2 + $0x148] sm:$0xff]
    %v83 = vld [vmem:[#allocation2 + $0x150] sm:$0xff]
    %v84 = vld [vmem:[#allocation2 + $0x158] sm:$0xff]
    %v85 = vld [vmem:[#allocation2 + $0x160] sm:$0xff]
    %v86 = vld [vmem:[#allocation2 + $0x168] sm:$0xff]
    %v87 = vld [vmem:[#allocation2 + $0x170] sm:$0xff]
    %v88 = vld [vmem:[#allocation2 + $0x178] sm:$0xff]
    %v89 = vld [vmem:[#allocation2 + $0x180] sm:$0xff]
    %v90 = vld [vmem:[#allocation2 + $0x188] sm:$0xff]
    %v91 = vld [vmem:[#allocation2 + $0x190] sm:$0xff]
    %v92 = vld [vmem:[#allocation2 + $0x198] sm:$0xff]
    %v93 = vld [vmem:[#allocation2 + $0x1a0] sm:$0xff]
    %v94 = vld [vmem:[#allocation2 + $0x1a8] sm:$0xff]
    %v95 = vld [vmem:[#allocation2 + $0x1b0] sm:$0xff]
    %v96 = vld [vmem:[#allocation2 + $0x1b8] sm:$0xff]
    %v97 = vld [vmem:[#allocation2 + $0x1c0] sm:$0xff]
    %v98 = vld [vmem:[#allocation2 + $0x1c8] sm:$0xff]
    %v99 = vld [vmem:[#allocation2 + $0x1d0] sm:$0xff]
    %v100 = vld [vmem:[#allocation2 + $0x1d8] sm:$0xff]
    %v101 = vld [vmem:[#allocation2 + $0x1e0] sm:$0xff]
    %v102 = vld [vmem:[#allocation2 + $0x1e8] sm:$0xff]
    %v103 = vld [vmem:[#allocation2 + $0x1f0] sm:$0xff]
    %v104 = vld [vmem:[#allocation2 + $0x1f8] sm:$0xff]
    %v105 = vld [vmem:[#allocation2 + $0x200] sm:$0xff]
    %v106 = vld [vmem:[#allocation2 + $0x208] sm:$0xff]
    %v107 = vld [vmem:[#allocation2 + $0x210] sm:$0xff]
    %v108 = vld [vmem:[#allocation2 + $0x218] sm:$0xff]
    %v109 = vld [vmem:[#allocation2 + $0x220] sm:$0xff]
    %v110 = vld [vmem:[#allocation2 + $0x228] sm:$0xff]
    %v111 = vld [vmem:[#allocation2 + $0x230] sm:$0xff]
    %v112 = vld [vmem:[#allocation2 + $0x238] sm:$0xff]
    %v113 = vld [vmem:[#allocation2 + $0x240] sm:$0xff]
    %v114 = vld [vmem:[#allocation2 + $0x248] sm:$0xff]
    %v115 = vld [vmem:[#allocation2 + $0x250] sm:$0xff]
    %v116 = vld [vmem:[#allocation2 + $0x258] sm:$0xff]
    %v117 = vld [vmem:[#allocation2 + $0x260] sm:$0xff]
    %v118 = vld [vmem:[#allocation2 + $0x268] sm:$0xff]
    %v119 = vld [vmem:[#allocation2 + $0x270] sm:$0xff]
    %v120 = vld [vmem:[#allocation2 + $0x278] sm:$0xff]
    %v121 = vld [vmem:[#allocation2 + $0x280] sm:$0xff]
    %v122 = vld [vmem:[#allocation2 + $0x288] sm:$0xff]
    %v123 = vld [vmem:[#allocation2 + $0x290] sm:$0xff]
    %v124 = vld [vmem:[#allocation2 + $0x298] sm:$0xff]
    %v125 = vld [vmem:[#allocation2 + $0x2a0] sm:$0xff]
    %v126 = vld [vmem:[#allocation2 + $0x2a8] sm:$0xff]
    %v127 = vld [vmem:[#allocation2 + $0x2b0] sm:$0xff]
    %v128 = vld [vmem:[#allocation2 + $0x2b8] sm:$0xff]
    %v129 = vld [vmem:[#allocation2 + $0x2c0] sm:$0xff]
    %v130 = vld [vmem:[#allocation2 + $0x2c8] sm:$0xff]
    %v131 = vld [vmem:[#allocation2 + $0x2d0] sm:$0xff]
    %v132 = vld [vmem:[#allocation2 + $0x2d8] sm:$0xff]
    %v133 = vld [vmem:[#allocation2 + $0x2e0] sm:$0xff]
    %v134 = vld [vmem:[#allocation2 + $0x2e8] sm:$0xff]
    %v135 = vld [vmem:[#allocation2 + $0x2f0] sm:$0xff]
    %v136 = vld [vmem:[#allocation2 + $0x2f8] sm:$0xff]
    %v137 = vld [vmem:[#allocation2 + $0x300] sm:$0xff]
    %v138 = vld [vmem:[#allocation2 + $0x308] sm:$0xff]
    %v139 = vld [vmem:[#allocation2 + $0x310] sm:$0xff]
    %v140 = vld [vmem:[#allocation2 + $0x318] sm:$0xff]
    %v141 = vld [vmem:[#allocation2 + $0x320] sm:$0xff]
    %v142 = vld [vmem:[#allocation2 + $0x328] sm:$0xff]
    %v143 = vld [vmem:[#allocation2 + $0x330] sm:$0xff]
    %v144 = vld [vmem:[#allocation2 + $0x338] sm:$0xff]
    %v145 = vld [vmem:[#allocation2 + $0x340] sm:$0xff]
    %v146 = vld [vmem:[#allocation2 + $0x348] sm:$0xff]
    %v147 = vld [vmem:[#allocation2 + $0x350] sm:$0xff]
    %v148 = vld [vmem:[#allocation2 + $0x358] sm:$0xff]
    %v149 = vld [vmem:[#allocation2 + $0x360] sm:$0xff]
    %v150 = vld [vmem:[#allocation2 + $0x368] sm:$0xff]
    %v151 = vld [vmem:[#allocation2 + $0x370] sm:$0xff]
    %v152 = vld [vmem:[#allocation2 + $0x378] sm:$0xff]
    %v153 = vld [vmem:[#allocation2 + $0x380] sm:$0xff]
    %v154 = vld [vmem:[#allocation2 + $0x388] sm:$0xff]
    %v155 = vld [vmem:[#allocation2 + $0x390] sm:$0xff]
    %v156 = vld [vmem:[#allocation2 + $0x398] sm:$0xff]
    %v157 = vld [vmem:[#allocation2 + $0x3a0] sm:$0xff]
    %v158 = vld [vmem:[#allocation2 + $0x3a8] sm:$0xff]
    %v159 = vld [vmem:[#allocation2 + $0x3b0] sm:$0xff]
    %v160 = vld [vmem:[#allocation2 + $0x3b8] sm:$0xff]
    %v161 = vld [vmem:[#allocation2 + $0x3c0] sm:$0xff]
    %v162 = vld [vmem:[#allocation2 + $0x3c8] sm:$0xff]
    %v163 = vld [vmem:[#allocation2 + $0x3d0] sm:$0xff]
    %v164 = vld [vmem:[#allocation2 + $0x3d8] sm:$0xff]
    %v165 = vld [vmem:[#allocation2 + $0x3e0] sm:$0xff]
    %v166 = vld [vmem:[#allocation2 + $0x3e8] sm:$0xff]
    %v167 = vld [vmem:[#allocation2 + $0x3f0] sm:$0xff]
    %v168 = vld [vmem:[#allocation2 + $0x3f8] sm:$0xff]
    %v169 = vpack.c.bf16 %v43, %v41
    %v170 = vpack.c.bf16 %v44, %v42
    %v171 = vpack.c.bf16 %v47, %v45
    %v172 = vpack.c.bf16 %v48, %v46
    %v173 = vpack.c.bf16 %v51, %v49
    %v174 = vpack.c.bf16 %v52, %v50
    %v175 = vpack.c.bf16 %v55, %v53
    %v176 = vpack.c.bf16 %v56, %v54
    %v177 = vpack.c.bf16 %v59, %v57
    %v178 = vpack.c.bf16 %v60, %v58
    %v179 = vpack.c.bf16 %v63, %v61
    %v180 = vpack.c.bf16 %v64, %v62
    %v181 = vpack.c.bf16 %v67, %v65
    %v182 = vpack.c.bf16 %v68, %v66
    %v183 = vpack.c.bf16 %v71, %v69
    %v184 = vpack.c.bf16 %v72, %v70
    %v185 = vpack.c.bf16 %v75, %v73
    %v186 = vpack.c.bf16 %v76, %v74
    %v187 = vpack.c.bf16 %v79, %v77
    %v188 = vpack.c.bf16 %v80, %v78
    %v189 = vpack.c.bf16 %v83, %v81
    %v190 = vpack.c.bf16 %v84, %v82
    %v191 = vpack.c.bf16 %v87, %v85
    %v192 = vpack.c.bf16 %v88, %v86
    %v193 = vpack.c.bf16 %v91, %v89
    %v194 = vpack.c.bf16 %v92, %v90
    %v195 = vpack.c.bf16 %v95, %v93
    %v196 = vpack.c.bf16 %v96, %v94
    %v197 = vpack.c.bf16 %v99, %v97
    %v198 = vpack.c.bf16 %v100, %v98
    %v199 = vpack.c.bf16 %v103, %v101
    %v200 = vpack.c.bf16 %v104, %v102
    %v201 = vpack.c.bf16 %v107, %v105
    %v202 = vpack.c.bf16 %v108, %v106
    %v203 = vpack.c.bf16 %v111, %v109
    %v204 = vpack.c.bf16 %v112, %v110
    %v205 = vpack.c.bf16 %v115, %v113
    %v206 = vpack.c.bf16 %v116, %v114
    %v207 = vpack.c.bf16 %v119, %v117
    %v208 = vpack.c.bf16 %v120, %v118
    %v209 = vpack.c.bf16 %v123, %v121
    %v210 = vpack.c.bf16 %v124, %v122
    %v211 = vpack.c.bf16 %v127, %v125
    %v212 = vpack.c.bf16 %v128, %v126
    %v213 = vpack.c.bf16 %v131, %v129
    %v214 = vpack.c.bf16 %v132, %v130
    %v215 = vpack.c.bf16 %v135, %v133
    %v216 = vpack.c.bf16 %v136, %v134
    %v217 = vpack.c.bf16 %v139, %v137
    %v218 = vpack.c.bf16 %v140, %v138
    %v219 = vpack.c.bf16 %v143, %v141
    %v220 = vpack.c.bf16 %v144, %v142
    %v221 = vpack.c.bf16 %v147, %v145
    %v222 = vpack.c.bf16 %v148, %v146
    %v223 = vpack.c.bf16 %v151, %v149
    %v224 = vpack.c.bf16 %v152, %v150
    %v225 = vpack.c.bf16 %v155, %v153
    %v226 = vpack.c.bf16 %v156, %v154
    %v227 = vpack.c.bf16 %v159, %v157
    %v228 = vpack.c.bf16 %v160, %v158
    %v229 = vpack.c.bf16 %v163, %v161
    %v230 = vpack.c.bf16 %v164, %v162
    %v231 = vpack.c.bf16 %v167, %v165
    %v232 = vpack.c.bf16 %v168, %v166
    %v233 = vld [vmem:[%s1] sm:$0xf]
    %v234 = vld [vmem:[%s1 + $0x4] sm:$0xf]
    %v235 = vld [vmem:[%s1 + $0x8] sm:$0xf]
    %v236 = vld [vmem:[%s1 + $0xc] sm:$0xf]
    %v237 = vld [vmem:[%s1 + $0x10] sm:$0xf]
    %v238 = vld [vmem:[%s1 + $0x14] sm:$0xf]
    %v239 = vld [vmem:[%s1 + $0x18] sm:$0xf]
    %v240 = vld [vmem:[%s1 + $0x1c] sm:$0xf]
    %v241 = vld [vmem:[%s1 + $0x20] sm:$0xf]
    %v242 = vld [vmem:[%s1 + $0x24] sm:$0xf]
    %v243 = vld [vmem:[%s1 + $0x28] sm:$0xf]
    %v244 = vld [vmem:[%s1 + $0x2c] sm:$0xf]
    %v245 = vld [vmem:[%s1 + $0x30] sm:$0xf]
    %v246 = vld [vmem:[%s1 + $0x34] sm:$0xf]
    %v247 = vld [vmem:[%s1 + $0x38] sm:$0xf]
    %v248 = vld [vmem:[%s1 + $0x3c] sm:$0xf]
    %v249 = vld [vmem:[%s1 + $0x40] sm:$0xf]
    %v250 = vld [vmem:[%s1 + $0x44] sm:$0xf]
    %v251 = vld [vmem:[%s1 + $0x48] sm:$0xf]
    %v252 = vld [vmem:[%s1 + $0x4c] sm:$0xf]
    %v253 = vld [vmem:[%s1 + $0x50] sm:$0xf]
    %v254 = vld [vmem:[%s1 + $0x54] sm:$0xf]
    %v255 = vld [vmem:[%s1 + $0x58] sm:$0xf]
    %v256 = vld [vmem:[%s1 + $0x5c] sm:$0xf]
    %v257 = vld [vmem:[%s1 + $0x60] sm:$0xf]
    %v258 = vld [vmem:[%s1 + $0x64] sm:$0xf]
    %v259 = vld [vmem:[%s1 + $0x68] sm:$0xf]
    %v260 = vld [vmem:[%s1 + $0x6c] sm:$0xf]
    %v261 = vld [vmem:[%s1 + $0x70] sm:$0xf]
    %v262 = vld [vmem:[%s1 + $0x74] sm:$0xf]
    %v263 = vld [vmem:[%s1 + $0x78] sm:$0xf]
    %v264 = vld [vmem:[%s1 + $0x7c] sm:$0xf]
    %v265 = vld [vmem:[%s2] sm:$0x1]
    %v267 = vlaneseq
    %v268 = vshrl.u32 %v267, 7
    %v269 = vsub.s32 0, %v268
    %v270 = vrot.slane %v265, %v269
    %v304 = vunpack.c.l.b16 %v233
    %v305 = vunpack.c.l.b16 %v234
    %v306 = vunpack.c.l.b16 %v235
    %v307 = vunpack.c.l.b16 %v236
    %v308 = vunpack.c.l.b16 %v237
    %v309 = vunpack.c.l.b16 %v238
    %v310 = vunpack.c.l.b16 %v239
    %v311 = vunpack.c.l.b16 %v240
    %v312 = vunpack.c.l.b16 %v241
    %v313 = vunpack.c.l.b16 %v242
    %v314 = vunpack.c.l.b16 %v243
    %v315 = vunpack.c.l.b16 %v244
    %v316 = vunpack.c.l.b16 %v245
    %v317 = vunpack.c.l.b16 %v246
    %v318 = vunpack.c.l.b16 %v247
    %v319 = vunpack.c.l.b16 %v248
    %v320 = vunpack.c.l.b16 %v249
    %v321 = vunpack.c.l.b16 %v250
    %v322 = vunpack.c.l.b16 %v251
    %v323 = vunpack.c.l.b16 %v252
    %v324 = vunpack.c.l.b16 %v253
    %v325 = vunpack.c.l.b16 %v254
    %v326 = vunpack.c.l.b16 %v255
    %v327 = vunpack.c.l.b16 %v256
    %v328 = vunpack.c.l.b16 %v257
    %v329 = vunpack.c.l.b16 %v258
    %v330 = vunpack.c.l.b16 %v259
    %v331 = vunpack.c.l.b16 %v260
    %v332 = vunpack.c.l.b16 %v261
    %v333 = vunpack.c.l.b16 %v262
    %v334 = vunpack.c.l.b16 %v263
    %v335 = vunpack.c.l.b16 %v264
    %v336 = vpack.c.b16 %v305, %v304
    %v337 = vpack.c.b16 %v307, %v306
    %v338 = vpack.c.b16 %v309, %v308
    %v339 = vpack.c.b16 %v311, %v310
    %v340 = vpack.c.b16 %v313, %v312
    %v341 = vpack.c.b16 %v315, %v314
    %v342 = vpack.c.b16 %v317, %v316
    %v343 = vpack.c.b16 %v319, %v318
    %v344 = vpack.c.b16 %v321, %v320
    %v345 = vpack.c.b16 %v323, %v322
    %v346 = vpack.c.b16 %v325, %v324
    %v347 = vpack.c.b16 %v327, %v326
    %v348 = vpack.c.b16 %v329, %v328
    %v349 = vpack.c.b16 %v331, %v330
    %v350 = vpack.c.b16 %v333, %v332
    %v351 = vpack.c.b16 %v335, %v334
    %368 = vmatprep.subr.bf16.mxu0 0
    %369 = vmatpush1.bf16.msra.mxu0 %v336
    %370 = vmatprep.subr.bf16.mxu0 0
    %371 = vmatpush1.bf16.msra.mxu0 %v337
    %372 = vmatprep.subr.bf16.mxu0 0
    %373 = vmatpush1.bf16.msra.mxu0 %v338
    %374 = vmatprep.subr.bf16.mxu0 0
    %375 = vmatpush1.bf16.msra.mxu0 %v339
    %376 = vmatprep.subr.bf16.mxu0 0
    %377 = vmatpush1.bf16.msra.mxu0 %v340
    %378 = vmatprep.subr.bf16.mxu0 0
    %379 = vmatpush1.bf16.msra.mxu0 %v341
    %380 = vmatprep.subr.bf16.mxu0 0
    %381 = vmatpush1.bf16.msra.mxu0 %v342
    %382 = vmatprep.subr.bf16.mxu0 0
    %383 = vmatpush1.bf16.msra.mxu0 %v343
    %384 = vmatprep.subr.bf16.mxu0 0
    %385 = vmatpush1.bf16.msra.mxu0 %v344
    %386 = vmatprep.subr.bf16.mxu0 0
    %387 = vmatpush1.bf16.msra.mxu0 %v345
    %388 = vmatprep.subr.bf16.mxu0 0
    %389 = vmatpush1.bf16.msra.mxu0 %v346
    %390 = vmatprep.subr.bf16.mxu0 0
    %391 = vmatpush1.bf16.msra.mxu0 %v347
    %392 = vmatprep.subr.bf16.mxu0 0
    %393 = vmatpush1.bf16.msra.mxu0 %v348
    %394 = vmatprep.subr.bf16.mxu0 0
    %395 = vmatpush1.bf16.msra.mxu0 %v349
    %396 = vmatprep.subr.bf16.mxu0 0
    %397 = vmatpush1.bf16.msra.mxu0 %v350
    %398 = vmatprep.subr.bf16.mxu0 0
    %399 = vmatpush1.bf16.msra.mxu0 %v351
    %400 = vmatprep.mubr.bf16.mxu0 %v170
    %401 = vmatmul.mubr.bf16.gmra.mrb[0].mxu0 %v169
    %v402 = vpop.f32.mrb[0].mxu0
    %v403 = vadd.f32 %v270, %v402
    %v404 = vpop.f32.mrb[0].mxu0
    %v405 = vpop.f32.mrb[0].mxu0
    %v406 = vadd.f32 %v270, %v405
    %v407 = vpop.f32.mrb[0].mxu0
    %408 = vmatprep.mubr.bf16.mxu0 %v172
    %409 = vmatmul.mubr.bf16.gmra.mrb[0].mxu0 %v171
    %v410 = vpop.f32.mrb[0].mxu0
    %v411 = vadd.f32 %v270, %v410
    %v412 = vpop.f32.mrb[0].mxu0
    %v413 = vpop.f32.mrb[0].mxu0
    %v414 = vadd.f32 %v270, %v413
    %v415 = vpop.f32.mrb[0].mxu0
    %416 = vmatprep.mubr.bf16.mxu0 %v174
    %417 = vmatmul.mubr.bf16.gmra.mrb[0].mxu0 %v173
    %v418 = vpop.f32.mrb[0].mxu0
    %v419 = vadd.f32 %v270, %v418
    %v420 = vpop.f32.mrb[0].mxu0
    %v421 = vpop.f32.mrb[0].mxu0
    %v422 = vadd.f32 %v270, %v421
    %v423 = vpop.f32.mrb[0].mxu0
    %424 = vmatprep.mubr.bf16.mxu0 %v176
    %425 = vmatmul.mubr.bf16.gmra.mrb[0].mxu0 %v175
    %v426 = vpop.f32.mrb[0].mxu0
    %v427 = vadd.f32 %v270, %v426
    %v428 = vpop.f32.mrb[0].mxu0
    %v429 = vpop.f32.mrb[0].mxu0
    %v430 = vadd.f32 %v270, %v429
    %v431 = vpop.f32.mrb[0].mxu0
    %432 = vmatprep.mubr.bf16.mxu0 %v178
    %433 = vmatmul.mubr.bf16.gmra.mrb[0].mxu0 %v177
    %v434 = vpop.f32.mrb[0].mxu0
    %v435 = vadd.f32 %v270, %v434
    %v436 = vpop.f32.mrb[0].mxu0
    %v437 = vpop.f32.mrb[0].mxu0
    %v438 = vadd.f32 %v270, %v437
    %v439 = vpop.f32.mrb[0].mxu0
    %440 = vmatprep.mubr.bf16.mxu0 %v180
    %441 = vmatmul.mubr.bf16.gmra.mrb[0].mxu0 %v179
    %v442 = vpop.f32.mrb[0].mxu0
    %v443 = vadd.f32 %v270, %v442
    %v444 = vpop.f32.mrb[0].mxu0
    %v445 = vpop.f32.mrb[0].mxu0
    %v446 = vadd.f32 %v270, %v445
    %v447 = vpop.f32.mrb[0].mxu0
    %448 = vmatprep.mubr.bf16.mxu0 %v182
    %449 = vmatmul.mubr.bf16.gmra.mrb[0].mxu0 %v181
    %v450 = vpop.f32.mrb[0].mxu0
    %v451 = vadd.f32 %v270, %v450
    %v452 = vpop.f32.mrb[0].mxu0
    %v453 = vpop.f32.mrb[0].mxu0
    %v454 = vadd.f32 %v270, %v453
    %v455 = vpop.f32.mrb[0].mxu0
    %456 = vmatprep.mubr.bf16.mxu0 %v184
    %457 = vmatmul.mubr.bf16.gmra.mrb[0].mxu0 %v183
    %v458 = vpop.f32.mrb[0].mxu0
    %v459 = vadd.f32 %v270, %v458
    %v460 = vpop.f32.mrb[0].mxu0
    %v461 = vpop.f32.mrb[0].mxu0
    %v462 = vadd.f32 %v270, %v461
    %v463 = vpop.f32.mrb[0].mxu0
    %464 = vmatprep.mubr.bf16.mxu0 %v186
    %465 = vmatmul.mubr.bf16.gmra.mrb[0].mxu0 %v185
    %v466 = vpop.f32.mrb[0].mxu0
    %v467 = vadd.f32 %v270, %v466
    %v468 = vpop.f32.mrb[0].mxu0
    %v469 = vpop.f32.mrb[0].mxu0
    %v470 = vadd.f32 %v270, %v469
    %v471 = vpop.f32.mrb[0].mxu0
    %472 = vmatprep.mubr.bf16.mxu0 %v188
    %473 = vmatmul.mubr.bf16.gmra.mrb[0].mxu0 %v187
    %v474 = vpop.f32.mrb[0].mxu0
    %v475 = vadd.f32 %v270, %v474
    %v476 = vpop.f32.mrb[0].mxu0
    %v477 = vpop.f32.mrb[0].mxu0
    %v478 = vadd.f32 %v270, %v477
    %v479 = vpop.f32.mrb[0].mxu0
    %480 = vmatprep.mubr.bf16.mxu0 %v190
    %481 = vmatmul.mubr.bf16.gmra.mrb[0].mxu0 %v189
    %v482 = vpop.f32.mrb[0].mxu0
    %v483 = vadd.f32 %v270, %v482
    %v484 = vpop.f32.mrb[0].mxu0
    %v485 = vpop.f32.mrb[0].mxu0
    %v486 = vadd.f32 %v270, %v485
    %v487 = vpop.f32.mrb[0].mxu0
    %488 = vmatprep.mubr.bf16.mxu0 %v192
    %489 = vmatmul.mubr.bf16.gmra.mrb[0].mxu0 %v191
    %v490 = vpop.f32.mrb[0].mxu0
    %v491 = vadd.f32 %v270, %v490
    %v492 = vpop.f32.mrb[0].mxu0
    %v493 = vpop.f32.mrb[0].mxu0
    %v494 = vadd.f32 %v270, %v493
    %v495 = vpop.f32.mrb[0].mxu0
    %496 = vmatprep.mubr.bf16.mxu0 %v194
    %497 = vmatmul.mubr.bf16.gmra.mrb[0].mxu0 %v193
    %v498 = vpop.f32.mrb[0].mxu0
    %v499 = vadd.f32 %v270, %v498
    %v500 = vpop.f32.mrb[0].mxu0
    %v501 = vpop.f32.mrb[0].mxu0
    %v502 = vadd.f32 %v270, %v501
    %v503 = vpop.f32.mrb[0].mxu0
    %504 = vmatprep.mubr.bf16.mxu0 %v196
    %505 = vmatmul.mubr.bf16.gmra.mrb[0].mxu0 %v195
    %v506 = vpop.f32.mrb[0].mxu0
    %v507 = vadd.f32 %v270, %v506
    %v508 = vpop.f32.mrb[0].mxu0
    %v509 = vpop.f32.mrb[0].mxu0
    %v510 = vadd.f32 %v270, %v509
    %v511 = vpop.f32.mrb[0].mxu0
    %512 = vmatprep.mubr.bf16.mxu0 %v198
    %513 = vmatmul.mubr.bf16.gmra.mrb[0].mxu0 %v197
    %v514 = vpop.f32.mrb[0].mxu0
    %v515 = vadd.f32 %v270, %v514
    %v516 = vpop.f32.mrb[0].mxu0
    %v517 = vpop.f32.mrb[0].mxu0
    %v518 = vadd.f32 %v270, %v517
    %v519 = vpop.f32.mrb[0].mxu0
    %520 = vmatprep.mubr.bf16.mxu0 %v200
    %521 = vmatmul.mubr.bf16.gmra.mrb[0].mxu0 %v199
    %v522 = vpop.f32.mrb[0].mxu0
    %v523 = vadd.f32 %v270, %v522
    %v524 = vpop.f32.mrb[0].mxu0
    %v525 = vpop.f32.mrb[0].mxu0
    %v526 = vadd.f32 %v270, %v525
    %v527 = vpop.f32.mrb[0].mxu0
    %528 = vmatprep.mubr.bf16.mxu0 %v202
    %529 = vmatmul.mubr.bf16.gmra.mrb[0].mxu0 %v201
    %v530 = vpop.f32.mrb[0].mxu0
    %v531 = vadd.f32 %v270, %v530
    %v532 = vpop.f32.mrb[0].mxu0
    %v533 = vpop.f32.mrb[0].mxu0
    %v534 = vadd.f32 %v270, %v533
    %v535 = vpop.f32.mrb[0].mxu0
    %536 = vmatprep.mubr.bf16.mxu0 %v204
    %537 = vmatmul.mubr.bf16.gmra.mrb[0].mxu0 %v203
    %v538 = vpop.f32.mrb[0].mxu0
    %v539 = vadd.f32 %v270, %v538
    %v540 = vpop.f32.mrb[0].mxu0
    %v541 = vpop.f32.mrb[0].mxu0
    %v542 = vadd.f32 %v270, %v541
    %v543 = vpop.f32.mrb[0].mxu0
    %544 = vmatprep.mubr.bf16.mxu0 %v206
    %545 = vmatmul.mubr.bf16.gmra.mrb[0].mxu0 %v205
    %v546 = vpop.f32.mrb[0].mxu0
    %v547 = vadd.f32 %v270, %v546
    %v548 = vpop.f32.mrb[0].mxu0
    %v549 = vpop.f32.mrb[0].mxu0
    %v550 = vadd.f32 %v270, %v549
    %v551 = vpop.f32.mrb[0].mxu0
    %552 = vmatprep.mubr.bf16.mxu0 %v208
    %553 = vmatmul.mubr.bf16.gmra.mrb[0].mxu0 %v207
    %v554 = vpop.f32.mrb[0].mxu0
    %v555 = vadd.f32 %v270, %v554
    %v556 = vpop.f32.mrb[0].mxu0
    %v557 = vpop.f32.mrb[0].mxu0
    %v558 = vadd.f32 %v270, %v557
    %v559 = vpop.f32.mrb[0].mxu0
    %560 = vmatprep.mubr.bf16.mxu0 %v210
    %561 = vmatmul.mubr.bf16.gmra.mrb[0].mxu0 %v209
    %v562 = vpop.f32.mrb[0].mxu0
    %v563 = vadd.f32 %v270, %v562
    %v564 = vpop.f32.mrb[0].mxu0
    %v565 = vpop.f32.mrb[0].mxu0
    %v566 = vadd.f32 %v270, %v565
    %v567 = vpop.f32.mrb[0].mxu0
    %568 = vmatprep.mubr.bf16.mxu0 %v212
    %569 = vmatmul.mubr.bf16.gmra.mrb[0].mxu0 %v211
    %v570 = vpop.f32.mrb[0].mxu0
    %v571 = vadd.f32 %v270, %v570
    %v572 = vpop.f32.mrb[0].mxu0
    %v573 = vpop.f32.mrb[0].mxu0
    %v574 = vadd.f32 %v270, %v573
    %v575 = vpop.f32.mrb[0].mxu0
    %576 = vmatprep.mubr.bf16.mxu0 %v214
    %577 = vmatmul.mubr.bf16.gmra.mrb[0].mxu0 %v213
    %v578 = vpop.f32.mrb[0].mxu0
    %v579 = vadd.f32 %v270, %v578
    %v580 = vpop.f32.mrb[0].mxu0
    %v581 = vpop.f32.mrb[0].mxu0
    %v582 = vadd.f32 %v270, %v581
    %v583 = vpop.f32.mrb[0].mxu0
    %584 = vmatprep.mubr.bf16.mxu0 %v216
    %585 = vmatmul.mubr.bf16.gmra.mrb[0].mxu0 %v215
    %v586 = vpop.f32.mrb[0].mxu0
    %v587 = vadd.f32 %v270, %v586
    %v588 = vpop.f32.mrb[0].mxu0
    %v589 = vpop.f32.mrb[0].mxu0
    %v590 = vadd.f32 %v270, %v589
    %v591 = vpop.f32.mrb[0].mxu0
    %592 = vmatprep.mubr.bf16.mxu0 %v218
    %593 = vmatmul.mubr.bf16.gmra.mrb[0].mxu0 %v217
    %v594 = vpop.f32.mrb[0].mxu0
    %v595 = vadd.f32 %v270, %v594
    %v596 = vpop.f32.mrb[0].mxu0
    %v597 = vpop.f32.mrb[0].mxu0
    %v598 = vadd.f32 %v270, %v597
    %v599 = vpop.f32.mrb[0].mxu0
    %600 = vmatprep.mubr.bf16.mxu0 %v220
    %601 = vmatmul.mubr.bf16.gmra.mrb[0].mxu0 %v219
    %v602 = vpop.f32.mrb[0].mxu0
    %v603 = vadd.f32 %v270, %v602
    %v604 = vpop.f32.mrb[0].mxu0
    %v605 = vpop.f32.mrb[0].mxu0
    %v606 = vadd.f32 %v270, %v605
    %v607 = vpop.f32.mrb[0].mxu0
    %608 = vmatprep.mubr.bf16.mxu0 %v222
    %609 = vmatmul.mubr.bf16.gmra.mrb[0].mxu0 %v221
    %v610 = vpop.f32.mrb[0].mxu0
    %v611 = vadd.f32 %v270, %v610
    %v612 = vpop.f32.mrb[0].mxu0
    %v613 = vpop.f32.mrb[0].mxu0
    %v614 = vadd.f32 %v270, %v613
    %v615 = vpop.f32.mrb[0].mxu0
    %616 = vmatprep.mubr.bf16.mxu0 %v224
    %617 = vmatmul.mubr.bf16.gmra.mrb[0].mxu0 %v223
    %v618 = vpop.f32.mrb[0].mxu0
    %v619 = vadd.f32 %v270, %v618
    %v620 = vpop.f32.mrb[0].mxu0
    %v621 = vpop.f32.mrb[0].mxu0
    %v622 = vadd.f32 %v270, %v621
    %v623 = vpop.f32.mrb[0].mxu0
    %624 = vmatprep.mubr.bf16.mxu0 %v226
    %625 = vmatmul.mubr.bf16.gmra.mrb[0].mxu0 %v225
    %v626 = vpop.f32.mrb[0].mxu0
    %v627 = vadd.f32 %v270, %v626
    %v628 = vpop.f32.mrb[0].mxu0
    %v629 = vpop.f32.mrb[0].mxu0
    %v630 = vadd.f32 %v270, %v629
    %v631 = vpop.f32.mrb[0].mxu0
    %632 = vmatprep.mubr.bf16.mxu0 %v228
    %633 = vmatmul.mubr.bf16.gmra.mrb[0].mxu0 %v227
    %v634 = vpop.f32.mrb[0].mxu0
    %v635 = vadd.f32 %v270, %v634
    %v636 = vpop.f32.mrb[0].mxu0
    %v637 = vpop.f32.mrb[0].mxu0
    %v638 = vadd.f32 %v270, %v637
    %v639 = vpop.f32.mrb[0].mxu0
    %640 = vmatprep.mubr.bf16.mxu0 %v230
    %641 = vmatmul.mubr.bf16.gmra.mrb[0].mxu0 %v229
    %v642 = vpop.f32.mrb[0].mxu0
    %v643 = vadd.f32 %v270, %v642
    %v644 = vpop.f32.mrb[0].mxu0
    %v645 = vpop.f32.mrb[0].mxu0
    %v646 = vadd.f32 %v270, %v645
    %v647 = vpop.f32.mrb[0].mxu0
    %648 = vmatprep.mubr.bf16.mxu0 %v232
    %649 = vmatmul.mubr.bf16.gmra.mrb[0].mxu0 %v231
    %v650 = vpop.f32.mrb[0].mxu0
    %v651 = vadd.f32 %v270, %v650
    %v652 = vpop.f32.mrb[0].mxu0
    %v653 = vpop.f32.mrb[0].mxu0
    %v654 = vadd.f32 %v270, %v653
    %v655 = vpop.f32.mrb[0].mxu0
    %656 = vdwg.mxu0
    %v657 = vmax.f32 %v403, 0.0
    %v658 = vmax.f32 %v406, 0.0
    %v659 = vmax.f32 %v411, 0.0
    %v660 = vmax.f32 %v414, 0.0
    %v661 = vmax.f32 %v419, 0.0
    %v662 = vmax.f32 %v422, 0.0
    %v663 = vmax.f32 %v427, 0.0
    %v664 = vmax.f32 %v430, 0.0
    %v665 = vmax.f32 %v435, 0.0
    %v666 = vmax.f32 %v438, 0.0
    %v667 = vmax.f32 %v443, 0.0
    %v668 = vmax.f32 %v446, 0.0
    %v669 = vmax.f32 %v451, 0.0
    %v670 = vmax.f32 %v454, 0.0
    %v671 = vmax.f32 %v459, 0.0
    %v672 = vmax.f32 %v462, 0.0
    %v673 = vmax.f32 %v467, 0.0
    %v674 = vmax.f32 %v470, 0.0
    %v675 = vmax.f32 %v475, 0.0
    %v676 = vmax.f32 %v478, 0.0
    %v677 = vmax.f32 %v483, 0.0
    %v678 = vmax.f32 %v486, 0.0
    %v679 = vmax.f32 %v491, 0.0
    %v680 = vmax.f32 %v494, 0.0
    %v681 = vmax.f32 %v499, 0.0
    %v682 = vmax.f32 %v502, 0.0
    %v683 = vmax.f32 %v507, 0.0
    %v684 = vmax.f32 %v510, 0.0
    %v685 = vmax.f32 %v515, 0.0
    %v686 = vmax.f32 %v518, 0.0
    %v687 = vmax.f32 %v523, 0.0
    %v688 = vmax.f32 %v526, 0.0
    %v689 = vmax.f32 %v531, 0.0
    %v690 = vmax.f32 %v534, 0.0
    %v691 = vmax.f32 %v539, 0.0
    %v692 = vmax.f32 %v542, 0.0
    %v693 = vmax.f32 %v547, 0.0
    %v694 = vmax.f32 %v550, 0.0
    %v695 = vmax.f32 %v555, 0.0
    %v696 = vmax.f32 %v558, 0.0
    %v697 = vmax.f32 %v563, 0.0
    %v698 = vmax.f32 %v566, 0.0
    %v699 = vmax.f32 %v571, 0.0
    %v700 = vmax.f32 %v574, 0.0
    %v701 = vmax.f32 %v579, 0.0
    %v702 = vmax.f32 %v582, 0.0
    %v703 = vmax.f32 %v587, 0.0
    %v704 = vmax.f32 %v590, 0.0
    %v705 = vmax.f32 %v595, 0.0
    %v706 = vmax.f32 %v598, 0.0
    %v707 = vmax.f32 %v603, 0.0
    %v708 = vmax.f32 %v606, 0.0
    %v709 = vmax.f32 %v611, 0.0
    %v710 = vmax.f32 %v614, 0.0
    %v711 = vmax.f32 %v619, 0.0
    %v712 = vmax.f32 %v622, 0.0
    %v713 = vmax.f32 %v627, 0.0
    %v714 = vmax.f32 %v630, 0.0
    %v715 = vmax.f32 %v635, 0.0
    %v716 = vmax.f32 %v638, 0.0
    %v717 = vmax.f32 %v643, 0.0
    %v718 = vmax.f32 %v646, 0.0
    %v719 = vmax.f32 %v651, 0.0
    %v720 = vmax.f32 %v654, 0.0
    %v721 = vpack.c.bf16 %v658, %v657
    %v722 = vpack.c.bf16 %v660, %v659
    %v723 = vpack.c.bf16 %v662, %v661
    %v724 = vpack.c.bf16 %v664, %v663
    %v725 = vpack.c.bf16 %v666, %v665
    %v726 = vpack.c.bf16 %v668, %v667
    %v727 = vpack.c.bf16 %v670, %v669
    %v728 = vpack.c.bf16 %v672, %v671
    %v729 = vpack.c.bf16 %v674, %v673
    %v730 = vpack.c.bf16 %v676, %v675
    %v731 = vpack.c.bf16 %v678, %v677
    %v732 = vpack.c.bf16 %v680, %v679
    %v733 = vpack.c.bf16 %v682, %v681
    %v734 = vpack.c.bf16 %v684, %v683
    %v735 = vpack.c.bf16 %v686, %v685
    %v736 = vpack.c.bf16 %v688, %v687
    %v737 = vpack.c.bf16 %v690, %v689
    %v738 = vpack.c.bf16 %v692, %v691
    %v739 = vpack.c.bf16 %v694, %v693
    %v740 = vpack.c.bf16 %v696, %v695
    %v741 = vpack.c.bf16 %v698, %v697
    %v742 = vpack.c.bf16 %v700, %v699
    %v743 = vpack.c.bf16 %v702, %v701
    %v744 = vpack.c.bf16 %v704, %v703
    %v745 = vpack.c.bf16 %v706, %v705
    %v746 = vpack.c.bf16 %v708, %v707
    %v747 = vpack.c.bf16 %v710, %v709
    %v748 = vpack.c.bf16 %v712, %v711
    %v749 = vpack.c.bf16 %v714, %v713
    %v750 = vpack.c.bf16 %v716, %v715
    %v751 = vpack.c.bf16 %v718, %v717
    %v752 = vpack.c.bf16 %v720, %v719
    %v753 = vld [vmem:[%s3] sm:$0xf]
    %v754 = vld [vmem:[%s3 + $0x4] sm:$0xf]
    %v755 = vld [vmem:[%s3 + $0x8] sm:$0xf]
    %v756 = vld [vmem:[%s3 + $0xc] sm:$0xf]
    %v757 = vld [vmem:[%s3 + $0x10] sm:$0xf]
    %v758 = vld [vmem:[%s3 + $0x14] sm:$0xf]
    %v759 = vld [vmem:[%s3 + $0x18] sm:$0xf]
    %v760 = vld [vmem:[%s3 + $0x1c] sm:$0xf]
    %v761 = vld [vmem:[%s4] sm:$0x1]
    %v763 = vlaneseq
    %v764 = vshrl.u32 %v763, 7
    %v765 = vsub.s32 0, %v764
    %v766 = vrot.slane %v761, %v765
    %v776 = vunpack.c.l.b16 %v753
    %v777 = vunpack.c.l.b16 %v754
    %v778 = vunpack.c.l.b16 %v755
    %v779 = vunpack.c.l.b16 %v756
    %v780 = vunpack.c.l.b16 %v757
    %v781 = vunpack.c.l.b16 %v758
    %v782 = vunpack.c.l.b16 %v759
    %v783 = vunpack.c.l.b16 %v760
    %v784 = vpack.c.b16 %v777, %v776
    %v785 = vpack.c.b16 %v779, %v778
    %v786 = vpack.c.b16 %v781, %v780
    %v787 = vpack.c.b16 %v783, %v782
    %vm792 = vcmask 523264
    %v794 = vsel %vm792, %v721, 0
    %v797 = vsel %vm792, %v722, 0
    %v800 = vsel %vm792, %v723, 0
    %v803 = vsel %vm792, %v724, 0
    %v806 = vsel %vm792, %v725, 0
    %v809 = vsel %vm792, %v726, 0
    %v812 = vsel %vm792, %v727, 0
    %v815 = vsel %vm792, %v728, 0
    %v818 = vsel %vm792, %v729, 0
    %v821 = vsel %vm792, %v730, 0
    %v824 = vsel %vm792, %v731, 0
    %v827 = vsel %vm792, %v732, 0
    %v830 = vsel %vm792, %v733, 0
    %v833 = vsel %vm792, %v734, 0
    %v836 = vsel %vm792, %v735, 0
    %v839 = vsel %vm792, %v736, 0
    %v842 = vsel %vm792, %v737, 0
    %v845 = vsel %vm792, %v738, 0
    %v848 = vsel %vm792, %v739, 0
    %v851 = vsel %vm792, %v740, 0
    %v854 = vsel %vm792, %v741, 0
    %v857 = vsel %vm792, %v742, 0
    %v860 = vsel %vm792, %v743, 0
    %v863 = vsel %vm792, %v744, 0
    %v866 = vsel %vm792, %v745, 0
    %v869 = vsel %vm792, %v746, 0
    %v872 = vsel %vm792, %v747, 0
    %v875 = vsel %vm792, %v748, 0
    %v878 = vsel %vm792, %v749, 0
    %v881 = vsel %vm792, %v750, 0
    %v884 = vsel %vm792, %v751, 0
    %v887 = vsel %vm792, %v752, 0
    %889 = vmatprep.subr.bf16.mxu0 0
    %890 = vmatpush1.bf16.msra.mxu0 %v784
    %891 = vmatprep.subr.bf16.mxu0 0
    %892 = vmatpush1.bf16.msra.mxu0 %v785
    %893 = vmatprep.subr.bf16.mxu0 0
    %894 = vmatpush1.bf16.msra.mxu0 %v786
    %895 = vmatprep.subr.bf16.mxu0 0
    %896 = vmatpush1.bf16.msra.mxu0 %v787
    %897 = vmatprep.subr.bf16.mxu0 0
    %898 = vmatpush1.bf16.msra.mxu0 0
    %899 = vmatprep.subr.bf16.mxu0 0
    %900 = vmatpush1.bf16.msra.mxu0 0
    %901 = vmatprep.subr.bf16.mxu0 0
    %902 = vmatpush1.bf16.msra.mxu0 0
    %903 = vmatprep.subr.bf16.mxu0 0
    %904 = vmatpush1.bf16.msra.mxu0 0
    %905 = vmatprep.subr.bf16.mxu0 0
    %906 = vmatpush1.bf16.msra.mxu0 0
    %907 = vmatprep.subr.bf16.mxu0 0
    %908 = vmatpush1.bf16.msra.mxu0 0
    %909 = vmatprep.subr.bf16.mxu0 0
    %910 = vmatpush1.bf16.msra.mxu0 0
    %911 = vmatprep.subr.bf16.mxu0 0
    %912 = vmatpush1.bf16.msra.mxu0 0
    %913 = vmatprep.subr.bf16.mxu0 0
    %914 = vmatpush1.bf16.msra.mxu0 0
    %915 = vmatprep.subr.bf16.mxu0 0
    %916 = vmatpush1.bf16.msra.mxu0 0
    %917 = vmatprep.subr.bf16.mxu0 0
    %918 = vmatpush1.bf16.msra.mxu0 0
    %919 = vmatprep.subr.bf16.mxu0 0
    %920 = vmatpush1.bf16.msra.mxu0 0
    %921 = vmatprep.mubr.bf16.mxu0 0
    %922 = vmatmul.mubr.bf16.gmra.mrb[0].mxu0 %v794
    %v923 = vpop.f32.mrb[0].mxu0
    %v924 = vadd.f32 %v766, %v923
    %v925 = vpop.f32.mrb[0].mxu0
    %v926 = vpop.f32.mrb[0].mxu0
    %v927 = vadd.f32 %v766, %v926
    %v928 = vpop.f32.mrb[0].mxu0
    %929 = vmatprep.mubr.bf16.mxu0 0
    %930 = vmatmul.mubr.bf16.gmra.mrb[0].mxu0 %v797
    %v931 = vpop.f32.mrb[0].mxu0
    %v932 = vadd.f32 %v766, %v931
    %v933 = vpop.f32.mrb[0].mxu0
    %v934 = vpop.f32.mrb[0].mxu0
    %v935 = vadd.f32 %v766, %v934
    %v936 = vpop.f32.mrb[0].mxu0
    %937 = vmatprep.mubr.bf16.mxu0 0
    %938 = vmatmul.mubr.bf16.gmra.mrb[0].mxu0 %v800
    %v939 = vpop.f32.mrb[0].mxu0
    %v940 = vadd.f32 %v766, %v939
    %v941 = vpop.f32.mrb[0].mxu0
    %v942 = vpop.f32.mrb[0].mxu0
    %v943 = vadd.f32 %v766, %v942
    %v944 = vpop.f32.mrb[0].mxu0
    %945 = vmatprep.mubr.bf16.mxu0 0
    %946 = vmatmul.mubr.bf16.gmra.mrb[0].mxu0 %v803
    %v947 = vpop.f32.mrb[0].mxu0
    %v948 = vadd.f32 %v766, %v947
    %v949 = vpop.f32.mrb[0].mxu0
    %v950 = vpop.f32.mrb[0].mxu0
    %v951 = vadd.f32 %v766, %v950
    %v952 = vpop.f32.mrb[0].mxu0
    %953 = vmatprep.mubr.bf16.mxu0 0
    %954 = vmatmul.mubr.bf16.gmra.mrb[0].mxu0 %v806
    %v955 = vpop.f32.mrb[0].mxu0
    %v956 = vadd.f32 %v766, %v955
    %v957 = vpop.f32.mrb[0].mxu0
    %v958 = vpop.f32.mrb[0].mxu0
    %v959 = vadd.f32 %v766, %v958
    %v960 = vpop.f32.mrb[0].mxu0
    %961 = vmatprep.mubr.bf16.mxu0 0
    %962 = vmatmul.mubr.bf16.gmra.mrb[0].mxu0 %v809
    %v963 = vpop.f32.mrb[0].mxu0
    %v964 = vadd.f32 %v766, %v963
    %v965 = vpop.f32.mrb[0].mxu0
    %v966 = vpop.f32.mrb[0].mxu0
    %v967 = vadd.f32 %v766, %v966
    %v968 = vpop.f32.mrb[0].mxu0
    %969 = vmatprep.mubr.bf16.mxu0 0
    %970 = vmatmul.mubr.bf16.gmra.mrb[0].mxu0 %v812
    %v971 = vpop.f32.mrb[0].mxu0
    %v972 = vadd.f32 %v766, %v971
    %v973 = vpop.f32.mrb[0].mxu0
    %v974 = vpop.f32.mrb[0].mxu0
    %v975 = vadd.f32 %v766, %v974
    %v976 = vpop.f32.mrb[0].mxu0
    %977 = vmatprep.mubr.bf16.mxu0 0
    %978 = vmatmul.mubr.bf16.gmra.mrb[0].mxu0 %v815
    %v979 = vpop.f32.mrb[0].mxu0
    %v980 = vadd.f32 %v766, %v979
    %v981 = vpop.f32.mrb[0].mxu0
    %v982 = vpop.f32.mrb[0].mxu0
    %v983 = vadd.f32 %v766, %v982
    %v984 = vpop.f32.mrb[0].mxu0
    %985 = vmatprep.mubr.bf16.mxu0 0
    %986 = vmatmul.mubr.bf16.gmra.mrb[0].mxu0 %v818
    %v987 = vpop.f32.mrb[0].mxu0
    %v988 = vadd.f32 %v766, %v987
    %v989 = vpop.f32.mrb[0].mxu0
    %v990 = vpop.f32.mrb[0].mxu0
    %v991 = vadd.f32 %v766, %v990
    %v992 = vpop.f32.mrb[0].mxu0
    %993 = vmatprep.mubr.bf16.mxu0 0
    %994 = vmatmul.mubr.bf16.gmra.mrb[0].mxu0 %v821
    %v995 = vpop.f32.mrb[0].mxu0
    %v996 = vadd.f32 %v766, %v995
    %v997 = vpop.f32.mrb[0].mxu0
    %v998 = vpop.f32.mrb[0].mxu0
    %v999 = vadd.f32 %v766, %v998
    %v1000 = vpop.f32.mrb[0].mxu0
    %1001 = vmatprep.mubr.bf16.mxu0 0
    %1002 = vmatmul.mubr.bf16.gmra.mrb[0].mxu0 %v824
    %v1003 = vpop.f32.mrb[0].mxu0
    %v1004 = vadd.f32 %v766, %v1003
    %v1005 = vpop.f32.mrb[0].mxu0
    %v1006 = vpop.f32.mrb[0].mxu0
    %v1007 = vadd.f32 %v766, %v1006
    %v1008 = vpop.f32.mrb[0].mxu0
    %1009 = vmatprep.mubr.bf16.mxu0 0
    %1010 = vmatmul.mubr.bf16.gmra.mrb[0].mxu0 %v827
    %v1011 = vpop.f32.mrb[0].mxu0
    %v1012 = vadd.f32 %v766, %v1011
    %v1013 = vpop.f32.mrb[0].mxu0
    %v1014 = vpop.f32.mrb[0].mxu0
    %v1015 = vadd.f32 %v766, %v1014
    %v1016 = vpop.f32.mrb[0].mxu0
    %1017 = vmatprep.mubr.bf16.mxu0 0
    %1018 = vmatmul.mubr.bf16.gmra.mrb[0].mxu0 %v830
    %v1019 = vpop.f32.mrb[0].mxu0
    %v1020 = vadd.f32 %v766, %v1019
    %v1021 = vpop.f32.mrb[0].mxu0
    %v1022 = vpop.f32.mrb[0].mxu0
    %v1023 = vadd.f32 %v766, %v1022
    %v1024 = vpop.f32.mrb[0].mxu0
    %1025 = vmatprep.mubr.bf16.mxu0 0
    %1026 = vmatmul.mubr.bf16.gmra.mrb[0].mxu0 %v833
    %v1027 = vpop.f32.mrb[0].mxu0
    %v1028 = vadd.f32 %v766, %v1027
    %v1029 = vpop.f32.mrb[0].mxu0
    %v1030 = vpop.f32.mrb[0].mxu0
    %v1031 = vadd.f32 %v766, %v1030
    %v1032 = vpop.f32.mrb[0].mxu0
    %1033 = vmatprep.mubr.bf16.mxu0 0
    %1034 = vmatmul.mubr.bf16.gmra.mrb[0].mxu0 %v836
    %v1035 = vpop.f32.mrb[0].mxu0
    %v1036 = vadd.f32 %v766, %v1035
    %v1037 = vpop.f32.mrb[0].mxu0
    %v1038 = vpop.f32.mrb[0].mxu0
    %v1039 = vadd.f32 %v766, %v1038
    %v1040 = vpop.f32.mrb[0].mxu0
    %1041 = vmatprep.mubr.bf16.mxu0 0
    %1042 = vmatmul.mubr.bf16.gmra.mrb[0].mxu0 %v839
    %v1043 = vpop.f32.mrb[0].mxu0
    %v1044 = vadd.f32 %v766, %v1043
    %v1045 = vpop.f32.mrb[0].mxu0
    %v1046 = vpop.f32.mrb[0].mxu0
    %v1047 = vadd.f32 %v766, %v1046
    %v1048 = vpop.f32.mrb[0].mxu0
    %1049 = vmatprep.mubr.bf16.mxu0 0
    %1050 = vmatmul.mubr.bf16.gmra.mrb[0].mxu0 %v842
    %v1051 = vpop.f32.mrb[0].mxu0
    %v1052 = vadd.f32 %v766, %v1051
    %v1053 = vpop.f32.mrb[0].mxu0
    %v1054 = vpop.f32.mrb[0].mxu0
    %v1055 = vadd.f32 %v766, %v1054
    %v1056 = vpop.f32.mrb[0].mxu0
    %1057 = vmatprep.mubr.bf16.mxu0 0
    %1058 = vmatmul.mubr.bf16.gmra.mrb[0].mxu0 %v845
    %v1059 = vpop.f32.mrb[0].mxu0
    %v1060 = vadd.f32 %v766, %v1059
    %v1061 = vpop.f32.mrb[0].mxu0
    %v1062 = vpop.f32.mrb[0].mxu0
    %v1063 = vadd.f32 %v766, %v1062
    %v1064 = vpop.f32.mrb[0].mxu0
    %1065 = vmatprep.mubr.bf16.mxu0 0
    %1066 = vmatmul.mubr.bf16.gmra.mrb[0].mxu0 %v848
    %v1067 = vpop.f32.mrb[0].mxu0
    %v1068 = vadd.f32 %v766, %v1067
    %v1069 = vpop.f32.mrb[0].mxu0
    %v1070 = vpop.f32.mrb[0].mxu0
    %v1071 = vadd.f32 %v766, %v1070
    %v1072 = vpop.f32.mrb[0].mxu0
    %1073 = vmatprep.mubr.bf16.mxu0 0
    %1074 = vmatmul.mubr.bf16.gmra.mrb[0].mxu0 %v851
    %v1075 = vpop.f32.mrb[0].mxu0
    %v1076 = vadd.f32 %v766, %v1075
    %v1077 = vpop.f32.mrb[0].mxu0
    %v1078 = vpop.f32.mrb[0].mxu0
    %v1079 = vadd.f32 %v766, %v1078
    %v1080 = vpop.f32.mrb[0].mxu0
    %1081 = vmatprep.mubr.bf16.mxu0 0
    %1082 = vmatmul.mubr.bf16.gmra.mrb[0].mxu0 %v854
    %v1083 = vpop.f32.mrb[0].mxu0
    %v1084 = vadd.f32 %v766, %v1083
    %v1085 = vpop.f32.mrb[0].mxu0
    %v1086 = vpop.f32.mrb[0].mxu0
    %v1087 = vadd.f32 %v766, %v1086
    %v1088 = vpop.f32.mrb[0].mxu0
    %1089 = vmatprep.mubr.bf16.mxu0 0
    %1090 = vmatmul.mubr.bf16.gmra.mrb[0].mxu0 %v857
    %v1091 = vpop.f32.mrb[0].mxu0
    %v1092 = vadd.f32 %v766, %v1091
    %v1093 = vpop.f32.mrb[0].mxu0
    %v1094 = vpop.f32.mrb[0].mxu0
    %v1095 = vadd.f32 %v766, %v1094
    %v1096 = vpop.f32.mrb[0].mxu0
    %1097 = vmatprep.mubr.bf16.mxu0 0
    %1098 = vmatmul.mubr.bf16.gmra.mrb[0].mxu0 %v860
    %v1099 = vpop.f32.mrb[0].mxu0
    %v1100 = vadd.f32 %v766, %v1099
    %v1101 = vpop.f32.mrb[0].mxu0
    %v1102 = vpop.f32.mrb[0].mxu0
    %v1103 = vadd.f32 %v766, %v1102
    %v1104 = vpop.f32.mrb[0].mxu0
    %1105 = vmatprep.mubr.bf16.mxu0 0
    %1106 = vmatmul.mubr.bf16.gmra.mrb[0].mxu0 %v863
    %v1107 = vpop.f32.mrb[0].mxu0
    %v1108 = vadd.f32 %v766, %v1107
    %v1109 = vpop.f32.mrb[0].mxu0
    %v1110 = vpop.f32.mrb[0].mxu0
    %v1111 = vadd.f32 %v766, %v1110
    %v1112 = vpop.f32.mrb[0].mxu0
    %1113 = vmatprep.mubr.bf16.mxu0 0
    %1114 = vmatmul.mubr.bf16.gmra.mrb[0].mxu0 %v866
    %v1115 = vpop.f32.mrb[0].mxu0
    %v1116 = vadd.f32 %v766, %v1115
    %v1117 = vpop.f32.mrb[0].mxu0
    %v1118 = vpop.f32.mrb[0].mxu0
    %v1119 = vadd.f32 %v766, %v1118
    %v1120 = vpop.f32.mrb[0].mxu0
    %1121 = vmatprep.mubr.bf16.mxu0 0
    %1122 = vmatmul.mubr.bf16.gmra.mrb[0].mxu0 %v869
    %v1123 = vpop.f32.mrb[0].mxu0
    %v1124 = vadd.f32 %v766, %v1123
    %v1125 = vpop.f32.mrb[0].mxu0
    %v1126 = vpop.f32.mrb[0].mxu0
    %v1127 = vadd.f32 %v766, %v1126
    %v1128 = vpop.f32.mrb[0].mxu0
    %1129 = vmatprep.mubr.bf16.mxu0 0
    %1130 = vmatmul.mubr.bf16.gmra.mrb[0].mxu0 %v872
    %v1131 = vpop.f32.mrb[0].mxu0
    %v1132 = vadd.f32 %v766, %v1131
    %v1133 = vpop.f32.mrb[0].mxu0
    %v1134 = vpop.f32.mrb[0].mxu0
    %v1135 = vadd.f32 %v766, %v1134
    %v1136 = vpop.f32.mrb[0].mxu0
    %1137 = vmatprep.mubr.bf16.mxu0 0
    %1138 = vmatmul.mubr.bf16.gmra.mrb[0].mxu0 %v875
    %v1139 = vpop.f32.mrb[0].mxu0
    %v1140 = vadd.f32 %v766, %v1139
    %v1141 = vpop.f32.mrb[0].mxu0
    %v1142 = vpop.f32.mrb[0].mxu0
    %v1143 = vadd.f32 %v766, %v1142
    %v1144 = vpop.f32.mrb[0].mxu0
    %1145 = vmatprep.mubr.bf16.mxu0 0
    %1146 = vmatmul.mubr.bf16.gmra.mrb[0].mxu0 %v878
    %v1147 = vpop.f32.mrb[0].mxu0
    %v1148 = vadd.f32 %v766, %v1147
    %v1149 = vpop.f32.mrb[0].mxu0
    %v1150 = vpop.f32.mrb[0].mxu0
    %v1151 = vadd.f32 %v766, %v1150
    %v1152 = vpop.f32.mrb[0].mxu0
    %1153 = vmatprep.mubr.bf16.mxu0 0
    %1154 = vmatmul.mubr.bf16.gmra.mrb[0].mxu0 %v881
    %v1155 = vpop.f32.mrb[0].mxu0
    %v1156 = vadd.f32 %v766, %v1155
    %v1157 = vpop.f32.mrb[0].mxu0
    %v1158 = vpop.f32.mrb[0].mxu0
    %v1159 = vadd.f32 %v766, %v1158
    %v1160 = vpop.f32.mrb[0].mxu0
    %1161 = vmatprep.mubr.bf16.mxu0 0
    %1162 = vmatmul.mubr.bf16.gmra.mrb[0].mxu0 %v884
    %v1163 = vpop.f32.mrb[0].mxu0
    %v1164 = vadd.f32 %v766, %v1163
    %v1165 = vpop.f32.mrb[0].mxu0
    %v1166 = vpop.f32.mrb[0].mxu0
    %v1167 = vadd.f32 %v766, %v1166
    %v1168 = vpop.f32.mrb[0].mxu0
    %1169 = vmatprep.mubr.bf16.mxu0 0
    %1170 = vmatmul.mubr.bf16.gmra.mrb[0].mxu0 %v887
    %v1171 = vpop.f32.mrb[0].mxu0
    %v1172 = vadd.f32 %v766, %v1171
    %v1173 = vpop.f32.mrb[0].mxu0
    %v1174 = vpop.f32.mrb[0].mxu0
    %v1175 = vadd.f32 %v766, %v1174
    %v1176 = vpop.f32.mrb[0].mxu0
    %1177 = vdwg.mxu0
    %v1178 = vmax.f32 %v924, 0.0
    %v1179 = vmax.f32 %v927, 0.0
    %v1180 = vmax.f32 %v932, 0.0
    %v1181 = vmax.f32 %v935, 0.0
    %v1182 = vmax.f32 %v940, 0.0
    %v1183 = vmax.f32 %v943, 0.0
    %v1184 = vmax.f32 %v948, 0.0
    %v1185 = vmax.f32 %v951, 0.0
    %v1186 = vmax.f32 %v956, 0.0
    %v1187 = vmax.f32 %v959, 0.0
    %v1188 = vmax.f32 %v964, 0.0
    %v1189 = vmax.f32 %v967, 0.0
    %v1190 = vmax.f32 %v972, 0.0
    %v1191 = vmax.f32 %v975, 0.0
    %v1192 = vmax.f32 %v980, 0.0
    %v1193 = vmax.f32 %v983, 0.0
    %v1194 = vmax.f32 %v988, 0.0
    %v1195 = vmax.f32 %v991, 0.0
    %v1196 = vmax.f32 %v996, 0.0
    %v1197 = vmax.f32 %v999, 0.0
    %v1198 = vmax.f32 %v1004, 0.0
    %v1199 = vmax.f32 %v1007, 0.0
    %v1200 = vmax.f32 %v1012, 0.0
    %v1201 = vmax.f32 %v1015, 0.0
    %v1202 = vmax.f32 %v1020, 0.0
    %v1203 = vmax.f32 %v1023, 0.0
    %v1204 = vmax.f32 %v1028, 0.0
    %v1205 = vmax.f32 %v1031, 0.0
    %v1206 = vmax.f32 %v1036, 0.0
    %v1207 = vmax.f32 %v1039, 0.0
    %v1208 = vmax.f32 %v1044, 0.0
    %v1209 = vmax.f32 %v1047, 0.0
    %v1210 = vmax.f32 %v1052, 0.0
    %v1211 = vmax.f32 %v1055, 0.0
    %v1212 = vmax.f32 %v1060, 0.0
    %v1213 = vmax.f32 %v1063, 0.0
    %v1214 = vmax.f32 %v1068, 0.0
    %v1215 = vmax.f32 %v1071, 0.0
    %v1216 = vmax.f32 %v1076, 0.0
    %v1217 = vmax.f32 %v1079, 0.0
    %v1218 = vmax.f32 %v1084, 0.0
    %v1219 = vmax.f32 %v1087, 0.0
    %v1220 = vmax.f32 %v1092, 0.0
    %v1221 = vmax.f32 %v1095, 0.0
    %v1222 = vmax.f32 %v1100, 0.0
    %v1223 = vmax.f32 %v1103, 0.0
    %v1224 = vmax.f32 %v1108, 0.0
    %v1225 = vmax.f32 %v1111, 0.0
    %v1226 = vmax.f32 %v1116, 0.0
    %v1227 = vmax.f32 %v1119, 0.0
    %v1228 = vmax.f32 %v1124, 0.0
    %v1229 = vmax.f32 %v1127, 0.0
    %v1230 = vmax.f32 %v1132, 0.0
    %v1231 = vmax.f32 %v1135, 0.0
    %v1232 = vmax.f32 %v1140, 0.0
    %v1233 = vmax.f32 %v1143, 0.0
    %v1234 = vmax.f32 %v1148, 0.0
    %v1235 = vmax.f32 %v1151, 0.0
    %v1236 = vmax.f32 %v1156, 0.0
    %v1237 = vmax.f32 %v1159, 0.0
    %v1238 = vmax.f32 %v1164, 0.0
    %v1239 = vmax.f32 %v1167, 0.0
    %v1240 = vmax.f32 %v1172, 0.0
    %v1241 = vmax.f32 %v1175, 0.0
    %v1242 = vpack.c.bf16 %v1179, %v1178
    %v1243 = vpack.c.bf16 %v1181, %v1180
    %v1244 = vpack.c.bf16 %v1183, %v1182
    %v1245 = vpack.c.bf16 %v1185, %v1184
    %v1246 = vpack.c.bf16 %v1187, %v1186
    %v1247 = vpack.c.bf16 %v1189, %v1188
    %v1248 = vpack.c.bf16 %v1191, %v1190
    %v1249 = vpack.c.bf16 %v1193, %v1192
    %v1250 = vpack.c.bf16 %v1195, %v1194
    %v1251 = vpack.c.bf16 %v1197, %v1196
    %v1252 = vpack.c.bf16 %v1199, %v1198
    %v1253 = vpack.c.bf16 %v1201, %v1200
    %v1254 = vpack.c.bf16 %v1203, %v1202
    %v1255 = vpack.c.bf16 %v1205, %v1204
    %v1256 = vpack.c.bf16 %v1207, %v1206
    %v1257 = vpack.c.bf16 %v1209, %v1208
    %v1258 = vpack.c.bf16 %v1211, %v1210
    %v1259 = vpack.c.bf16 %v1213, %v1212
    %v1260 = vpack.c.bf16 %v1215, %v1214
    %v1261 = vpack.c.bf16 %v1217, %v1216
    %v1262 = vpack.c.bf16 %v1219, %v1218
    %v1263 = vpack.c.bf16 %v1221, %v1220
    %v1264 = vpack.c.bf16 %v1223, %v1222
    %v1265 = vpack.c.bf16 %v1225, %v1224
    %v1266 = vpack.c.bf16 %v1227, %v1226
    %v1267 = vpack.c.bf16 %v1229, %v1228
    %v1268 = vpack.c.bf16 %v1231, %v1230
    %v1269 = vpack.c.bf16 %v1233, %v1232
    %v1270 = vpack.c.bf16 %v1235, %v1234
    %v1271 = vpack.c.bf16 %v1237, %v1236
    %v1272 = vpack.c.bf16 %v1239, %v1238
    %v1273 = vpack.c.bf16 %v1241, %v1240
    %v1274 = vld [vmem:[%s5] sm:$0xf]
    %v1275 = vld [vmem:[%s5 + $0x4] sm:$0xf]
    %v1276 = vld [vmem:[%s5 + $0x8] sm:$0xf]
    %v1277 = vld [vmem:[%s5 + $0xc] sm:$0xf]
    %v1278 = vld [vmem:[%s6] sm:$0x1]
    %v1280 = vlaneseq
    %v1281 = vshrl.u32 %v1280, 7
    %v1282 = vsub.s32 0, %v1281
    %v1283 = vrot.slane %v1278, %v1282
    %v1289 = vunpack.c.l.b16 %v1274
    %v1290 = vunpack.c.l.b16 %v1275
    %v1291 = vunpack.c.l.b16 %v1276
    %v1292 = vunpack.c.l.b16 %v1277
    %v1293 = vpack.c.b16 %v1290, %v1289
    %v1294 = vpack.c.b16 %v1292, %v1291
    %vm1297 = vcmask 261120
    %v1299 = vsel %vm1297, %v1242, 0
    %v1302 = vsel %vm1297, %v1243, 0
    %v1305 = vsel %vm1297, %v1244, 0
    %v1308 = vsel %vm1297, %v1245, 0
    %v1311 = vsel %vm1297, %v1246, 0
    %v1314 = vsel %vm1297, %v1247, 0
    %v1317 = vsel %vm1297, %v1248, 0
    %v1320 = vsel %vm1297, %v1249, 0
    %v1323 = vsel %vm1297, %v1250, 0
    %v1326 = vsel %vm1297, %v1251, 0
    %v1329 = vsel %vm1297, %v1252, 0
    %v1332 = vsel %vm1297, %v1253, 0
    %v1335 = vsel %vm1297, %v1254, 0
    %v1338 = vsel %vm1297, %v1255, 0
    %v1341 = vsel %vm1297, %v1256, 0
    %v1344 = vsel %vm1297, %v1257, 0
    %v1347 = vsel %vm1297, %v1258, 0
    %v1350 = vsel %vm1297, %v1259, 0
    %v1353 = vsel %vm1297, %v1260, 0
    %v1356 = vsel %vm1297, %v1261, 0
    %v1359 = vsel %vm1297, %v1262, 0
    %v1362 = vsel %vm1297, %v1263, 0
    %v1365 = vsel %vm1297, %v1264, 0
    %v1368 = vsel %vm1297, %v1265, 0
    %v1371 = vsel %vm1297, %v1266, 0
    %v1374 = vsel %vm1297, %v1267, 0
    %v1377 = vsel %vm1297, %v1268, 0
    %v1380 = vsel %vm1297, %v1269, 0
    %v1383 = vsel %vm1297, %v1270, 0
    %v1386 = vsel %vm1297, %v1271, 0
    %v1389 = vsel %vm1297, %v1272, 0
    %v1392 = vsel %vm1297, %v1273, 0
    %1394 = vmatprep.subr.bf16.mxu0 0
    %1395 = vmatpush1.bf16.msra.mxu0 %v1293
    %1396 = vmatprep.subr.bf16.mxu0 0
    %1397 = vmatpush1.bf16.msra.mxu0 %v1294
    %1398 = vmatprep.subr.bf16.mxu0 0
    %1399 = vmatpush1.bf16.msra.mxu0 0
    %1400 = vmatprep.subr.bf16.mxu0 0
    %1401 = vmatpush1.bf16.msra.mxu0 0
    %1402 = vmatprep.subr.bf16.mxu0 0
    %1403 = vmatpush1.bf16.msra.mxu0 0
    %1404 = vmatprep.subr.bf16.mxu0 0
    %1405 = vmatpush1.bf16.msra.mxu0 0
    %1406 = vmatprep.subr.bf16.mxu0 0
    %1407 = vmatpush1.bf16.msra.mxu0 0
    %1408 = vmatprep.subr.bf16.mxu0 0
    %1409 = vmatpush1.bf16.msra.mxu0 0
    %1410 = vmatprep.subr.bf16.mxu0 0
    %1411 = vmatpush1.bf16.msra.mxu0 0
    %1412 = vmatprep.subr.bf16.mxu0 0
    %1413 = vmatpush1.bf16.msra.mxu0 0
    %1414 = vmatprep.subr.bf16.mxu0 0
    %1415 = vmatpush1.bf16.msra.mxu0 0
    %1416 = vmatprep.subr.bf16.mxu0 0
    %1417 = vmatpush1.bf16.msra.mxu0 0
    %1418 = vmatprep.subr.bf16.mxu0 0
    %1419 = vmatpush1.bf16.msra.mxu0 0
    %1420 = vmatprep.subr.bf16.mxu0 0
    %1421 = vmatpush1.bf16.msra.mxu0 0
    %1422 = vmatprep.subr.bf16.mxu0 0
    %1423 = vmatpush1.bf16.msra.mxu0 0
    %1424 = vmatprep.subr.bf16.mxu0 0
    %1425 = vmatpush1.bf16.msra.mxu0 0
    %1426 = vmatprep.mubr.bf16.mxu0 0
    %1427 = vmatmul.mubr.bf16.gmra.mrb[0].mxu0 %v1299
    %v1428 = vpop.f32.mrb[0].mxu0
    %v1429 = vadd.f32 %v1283, %v1428
    %v1430 = vpop.f32.mrb[0].mxu0
    %v1431 = vpop.f32.mrb[0].mxu0
    %v1432 = vadd.f32 %v1283, %v1431
    %v1433 = vpop.f32.mrb[0].mxu0
    %1434 = vmatprep.mubr.bf16.mxu0 0
    %1435 = vmatmul.mubr.bf16.gmra.mrb[0].mxu0 %v1302
    %v1436 = vpop.f32.mrb[0].mxu0
    %v1437 = vadd.f32 %v1283, %v1436
    %v1438 = vpop.f32.mrb[0].mxu0
    %v1439 = vpop.f32.mrb[0].mxu0
    %v1440 = vadd.f32 %v1283, %v1439
    %v1441 = vpop.f32.mrb[0].mxu0
    %1442 = vmatprep.mubr.bf16.mxu0 0
    %1443 = vmatmul.mubr.bf16.gmra.mrb[0].mxu0 %v1305
    %v1444 = vpop.f32.mrb[0].mxu0
    %v1445 = vadd.f32 %v1283, %v1444
    %v1446 = vpop.f32.mrb[0].mxu0
    %v1447 = vpop.f32.mrb[0].mxu0
    %v1448 = vadd.f32 %v1283, %v1447
    %v1449 = vpop.f32.mrb[0].mxu0
    %1450 = vmatprep.mubr.bf16.mxu0 0
    %1451 = vmatmul.mubr.bf16.gmra.mrb[0].mxu0 %v1308
    %v1452 = vpop.f32.mrb[0].mxu0
    %v1453 = vadd.f32 %v1283, %v1452
    %v1454 = vpop.f32.mrb[0].mxu0
    %v1455 = vpop.f32.mrb[0].mxu0
    %v1456 = vadd.f32 %v1283, %v1455
    %v1457 = vpop.f32.mrb[0].mxu0
    %1458 = vmatprep.mubr.bf16.mxu0 0
    %1459 = vmatmul.mubr.bf16.gmra.mrb[0].mxu0 %v1311
    %v1460 = vpop.f32.mrb[0].mxu0
    %v1461 = vadd.f32 %v1283, %v1460
    %v1462 = vpop.f32.mrb[0].mxu0
    %v1463 = vpop.f32.mrb[0].mxu0
    %v1464 = vadd.f32 %v1283, %v1463
    %v1465 = vpop.f32.mrb[0].mxu0
    %1466 = vmatprep.mubr.bf16.mxu0 0
    %1467 = vmatmul.mubr.bf16.gmra.mrb[0].mxu0 %v1314
    %v1468 = vpop.f32.mrb[0].mxu0
    %v1469 = vadd.f32 %v1283, %v1468
    %v1470 = vpop.f32.mrb[0].mxu0
    %v1471 = vpop.f32.mrb[0].mxu0
    %v1472 = vadd.f32 %v1283, %v1471
    %v1473 = vpop.f32.mrb[0].mxu0
    %1474 = vmatprep.mubr.bf16.mxu0 0
    %1475 = vmatmul.mubr.bf16.gmra.mrb[0].mxu0 %v1317
    %v1476 = vpop.f32.mrb[0].mxu0
    %v1477 = vadd.f32 %v1283, %v1476
    %v1478 = vpop.f32.mrb[0].mxu0
    %v1479 = vpop.f32.mrb[0].mxu0
    %v1480 = vadd.f32 %v1283, %v1479
    %v1481 = vpop.f32.mrb[0].mxu0
    %1482 = vmatprep.mubr.bf16.mxu0 0
    %1483 = vmatmul.mubr.bf16.gmra.mrb[0].mxu0 %v1320
    %v1484 = vpop.f32.mrb[0].mxu0
    %v1485 = vadd.f32 %v1283, %v1484
    %v1486 = vpop.f32.mrb[0].mxu0
    %v1487 = vpop.f32.mrb[0].mxu0
    %v1488 = vadd.f32 %v1283, %v1487
    %v1489 = vpop.f32.mrb[0].mxu0
    %1490 = vmatprep.mubr.bf16.mxu0 0
    %1491 = vmatmul.mubr.bf16.gmra.mrb[0].mxu0 %v1323
    %v1492 = vpop.f32.mrb[0].mxu0
    %v1493 = vadd.f32 %v1283, %v1492
    %v1494 = vpop.f32.mrb[0].mxu0
    %v1495 = vpop.f32.mrb[0].mxu0
    %v1496 = vadd.f32 %v1283, %v1495
    %v1497 = vpop.f32.mrb[0].mxu0
    %1498 = vmatprep.mubr.bf16.mxu0 0
    %1499 = vmatmul.mubr.bf16.gmra.mrb[0].mxu0 %v1326
    %v1500 = vpop.f32.mrb[0].mxu0
    %v1501 = vadd.f32 %v1283, %v1500
    %v1502 = vpop.f32.mrb[0].mxu0
    %v1503 = vpop.f32.mrb[0].mxu0
    %v1504 = vadd.f32 %v1283, %v1503
    %v1505 = vpop.f32.mrb[0].mxu0
    %1506 = vmatprep.mubr.bf16.mxu0 0
    %1507 = vmatmul.mubr.bf16.gmra.mrb[0].mxu0 %v1329
    %v1508 = vpop.f32.mrb[0].mxu0
    %v1509 = vadd.f32 %v1283, %v1508
    %v1510 = vpop.f32.mrb[0].mxu0
    %v1511 = vpop.f32.mrb[0].mxu0
    %v1512 = vadd.f32 %v1283, %v1511
    %v1513 = vpop.f32.mrb[0].mxu0
    %1514 = vmatprep.mubr.bf16.mxu0 0
    %1515 = vmatmul.mubr.bf16.gmra.mrb[0].mxu0 %v1332
    %v1516 = vpop.f32.mrb[0].mxu0
    %v1517 = vadd.f32 %v1283, %v1516
    %v1518 = vpop.f32.mrb[0].mxu0
    %v1519 = vpop.f32.mrb[0].mxu0
    %v1520 = vadd.f32 %v1283, %v1519
    %v1521 = vpop.f32.mrb[0].mxu0
    %1522 = vmatprep.mubr.bf16.mxu0 0
    %1523 = vmatmul.mubr.bf16.gmra.mrb[0].mxu0 %v1335
    %v1524 = vpop.f32.mrb[0].mxu0
    %v1525 = vadd.f32 %v1283, %v1524
    %v1526 = vpop.f32.mrb[0].mxu0
    %v1527 = vpop.f32.mrb[0].mxu0
    %v1528 = vadd.f32 %v1283, %v1527
    %v1529 = vpop.f32.mrb[0].mxu0
    %1530 = vmatprep.mubr.bf16.mxu0 0
    %1531 = vmatmul.mubr.bf16.gmra.mrb[0].mxu0 %v1338
    %v1532 = vpop.f32.mrb[0].mxu0
    %v1533 = vadd.f32 %v1283, %v1532
    %v1534 = vpop.f32.mrb[0].mxu0
    %v1535 = vpop.f32.mrb[0].mxu0
    %v1536 = vadd.f32 %v1283, %v1535
    %v1537 = vpop.f32.mrb[0].mxu0
    %1538 = vmatprep.mubr.bf16.mxu0 0
    %1539 = vmatmul.mubr.bf16.gmra.mrb[0].mxu0 %v1341
    %v1540 = vpop.f32.mrb[0].mxu0
    %v1541 = vadd.f32 %v1283, %v1540
    %v1542 = vpop.f32.mrb[0].mxu0
    %v1543 = vpop.f32.mrb[0].mxu0
    %v1544 = vadd.f32 %v1283, %v1543
    %v1545 = vpop.f32.mrb[0].mxu0
    %1546 = vmatprep.mubr.bf16.mxu0 0
    %1547 = vmatmul.mubr.bf16.gmra.mrb[0].mxu0 %v1344
    %v1548 = vpop.f32.mrb[0].mxu0
    %v1549 = vadd.f32 %v1283, %v1548
    %v1550 = vpop.f32.mrb[0].mxu0
    %v1551 = vpop.f32.mrb[0].mxu0
    %v1552 = vadd.f32 %v1283, %v1551
    %v1553 = vpop.f32.mrb[0].mxu0
    %1554 = vmatprep.mubr.bf16.mxu0 0
    %1555 = vmatmul.mubr.bf16.gmra.mrb[0].mxu0 %v1347
    %v1556 = vpop.f32.mrb[0].mxu0
    %v1557 = vadd.f32 %v1283, %v1556
    %v1558 = vpop.f32.mrb[0].mxu0
    %v1559 = vpop.f32.mrb[0].mxu0
    %v1560 = vadd.f32 %v1283, %v1559
    %v1561 = vpop.f32.mrb[0].mxu0
    %1562 = vmatprep.mubr.bf16.mxu0 0
    %1563 = vmatmul.mubr.bf16.gmra.mrb[0].mxu0 %v1350
    %v1564 = vpop.f32.mrb[0].mxu0
    %v1565 = vadd.f32 %v1283, %v1564
    %v1566 = vpop.f32.mrb[0].mxu0
    %v1567 = vpop.f32.mrb[0].mxu0
    %v1568 = vadd.f32 %v1283, %v1567
    %v1569 = vpop.f32.mrb[0].mxu0
    %1570 = vmatprep.mubr.bf16.mxu0 0
    %1571 = vmatmul.mubr.bf16.gmra.mrb[0].mxu0 %v1353
    %v1572 = vpop.f32.mrb[0].mxu0
    %v1573 = vadd.f32 %v1283, %v1572
    %v1574 = vpop.f32.mrb[0].mxu0
    %v1575 = vpop.f32.mrb[0].mxu0
    %v1576 = vadd.f32 %v1283, %v1575
    %v1577 = vpop.f32.mrb[0].mxu0
    %1578 = vmatprep.mubr.bf16.mxu0 0
    %1579 = vmatmul.mubr.bf16.gmra.mrb[0].mxu0 %v1356
    %v1580 = vpop.f32.mrb[0].mxu0
    %v1581 = vadd.f32 %v1283, %v1580
    %v1582 = vpop.f32.mrb[0].mxu0
    %v1583 = vpop.f32.mrb[0].mxu0
    %v1584 = vadd.f32 %v1283, %v1583
    %v1585 = vpop.f32.mrb[0].mxu0
    %1586 = vmatprep.mubr.bf16.mxu0 0
    %1587 = vmatmul.mubr.bf16.gmra.mrb[0].mxu0 %v1359
    %v1588 = vpop.f32.mrb[0].mxu0
    %v1589 = vadd.f32 %v1283, %v1588
    %v1590 = vpop.f32.mrb[0].mxu0
    %v1591 = vpop.f32.mrb[0].mxu0
    %v1592 = vadd.f32 %v1283, %v1591
    %v1593 = vpop.f32.mrb[0].mxu0
    %1594 = vmatprep.mubr.bf16.mxu0 0
    %1595 = vmatmul.mubr.bf16.gmra.mrb[0].mxu0 %v1362
    %v1596 = vpop.f32.mrb[0].mxu0
    %v1597 = vadd.f32 %v1283, %v1596
    %v1598 = vpop.f32.mrb[0].mxu0
    %v1599 = vpop.f32.mrb[0].mxu0
    %v1600 = vadd.f32 %v1283, %v1599
    %v1601 = vpop.f32.mrb[0].mxu0
    %1602 = vmatprep.mubr.bf16.mxu0 0
    %1603 = vmatmul.mubr.bf16.gmra.mrb[0].mxu0 %v1365
    %v1604 = vpop.f32.mrb[0].mxu0
    %v1605 = vadd.f32 %v1283, %v1604
    %v1606 = vpop.f32.mrb[0].mxu0
    %v1607 = vpop.f32.mrb[0].mxu0
    %v1608 = vadd.f32 %v1283, %v1607
    %v1609 = vpop.f32.mrb[0].mxu0
    %1610 = vmatprep.mubr.bf16.mxu0 0
    %1611 = vmatmul.mubr.bf16.gmra.mrb[0].mxu0 %v1368
    %v1612 = vpop.f32.mrb[0].mxu0
    %v1613 = vadd.f32 %v1283, %v1612
    %v1614 = vpop.f32.mrb[0].mxu0
    %v1615 = vpop.f32.mrb[0].mxu0
    %v1616 = vadd.f32 %v1283, %v1615
    %v1617 = vpop.f32.mrb[0].mxu0
    %1618 = vmatprep.mubr.bf16.mxu0 0
    %1619 = vmatmul.mubr.bf16.gmra.mrb[0].mxu0 %v1371
    %v1620 = vpop.f32.mrb[0].mxu0
    %v1621 = vadd.f32 %v1283, %v1620
    %v1622 = vpop.f32.mrb[0].mxu0
    %v1623 = vpop.f32.mrb[0].mxu0
    %v1624 = vadd.f32 %v1283, %v1623
    %v1625 = vpop.f32.mrb[0].mxu0
    %1626 = vmatprep.mubr.bf16.mxu0 0
    %1627 = vmatmul.mubr.bf16.gmra.mrb[0].mxu0 %v1374
    %v1628 = vpop.f32.mrb[0].mxu0
    %v1629 = vadd.f32 %v1283, %v1628
    %v1630 = vpop.f32.mrb[0].mxu0
    %v1631 = vpop.f32.mrb[0].mxu0
    %v1632 = vadd.f32 %v1283, %v1631
    %v1633 = vpop.f32.mrb[0].mxu0
    %1634 = vmatprep.mubr.bf16.mxu0 0
    %1635 = vmatmul.mubr.bf16.gmra.mrb[0].mxu0 %v1377
    %v1636 = vpop.f32.mrb[0].mxu0
    %v1637 = vadd.f32 %v1283, %v1636
    %v1638 = vpop.f32.mrb[0].mxu0
    %v1639 = vpop.f32.mrb[0].mxu0
    %v1640 = vadd.f32 %v1283, %v1639
    %v1641 = vpop.f32.mrb[0].mxu0
    %1642 = vmatprep.mubr.bf16.mxu0 0
    %1643 = vmatmul.mubr.bf16.gmra.mrb[0].mxu0 %v1380
    %v1644 = vpop.f32.mrb[0].mxu0
    %v1645 = vadd.f32 %v1283, %v1644
    %v1646 = vpop.f32.mrb[0].mxu0
    %v1647 = vpop.f32.mrb[0].mxu0
    %v1648 = vadd.f32 %v1283, %v1647
    %v1649 = vpop.f32.mrb[0].mxu0
    %1650 = vmatprep.mubr.bf16.mxu0 0
    %1651 = vmatmul.mubr.bf16.gmra.mrb[0].mxu0 %v1383
    %v1652 = vpop.f32.mrb[0].mxu0
    %v1653 = vadd.f32 %v1283, %v1652
    %v1654 = vpop.f32.mrb[0].mxu0
    %v1655 = vpop.f32.mrb[0].mxu0
    %v1656 = vadd.f32 %v1283, %v1655
    %v1657 = vpop.f32.mrb[0].mxu0
    %1658 = vmatprep.mubr.bf16.mxu0 0
    %1659 = vmatmul.mubr.bf16.gmra.mrb[0].mxu0 %v1386
    %v1660 = vpop.f32.mrb[0].mxu0
    %v1661 = vadd.f32 %v1283, %v1660
    %v1662 = vpop.f32.mrb[0].mxu0
    %v1663 = vpop.f32.mrb[0].mxu0
    %v1664 = vadd.f32 %v1283, %v1663
    %v1665 = vpop.f32.mrb[0].mxu0
    %1666 = vmatprep.mubr.bf16.mxu0 0
    %1667 = vmatmul.mubr.bf16.gmra.mrb[0].mxu0 %v1389
    %v1668 = vpop.f32.mrb[0].mxu0
    %v1669 = vadd.f32 %v1283, %v1668
    %v1670 = vpop.f32.mrb[0].mxu0
    %v1671 = vpop.f32.mrb[0].mxu0
    %v1672 = vadd.f32 %v1283, %v1671
    %v1673 = vpop.f32.mrb[0].mxu0
    %1674 = vmatprep.mubr.bf16.mxu0 0
    %1675 = vmatmul.mubr.bf16.gmra.mrb[0].mxu0 %v1392
    %v1676 = vpop.f32.mrb[0].mxu0
    %v1677 = vadd.f32 %v1283, %v1676
    %v1678 = vpop.f32.mrb[0].mxu0
    %v1679 = vpop.f32.mrb[0].mxu0
    %v1680 = vadd.f32 %v1283, %v1679
    %v1681 = vpop.f32.mrb[0].mxu0
    %1682 = vdwg.mxu0
    %vm1683 = vcmask 64512
    %v1684 = vsel %vm1683, %v1429, -inf
    %1685 = vmax.xlane.f32.xlu0 %v1684
    %v1686 = vpop.xlane.xlu0 %1685
    %v1687 = vsel %vm1683, %v1432, -inf
    %1688 = vmax.xlane.f32.xlu0 %v1687
    %v1689 = vpop.xlane.xlu0 %1688
    %v1690 = vsel %vm1683, %v1437, -inf
    %1691 = vmax.xlane.f32.xlu0 %v1690
    %v1692 = vpop.xlane.xlu0 %1691
    %v1693 = vsel %vm1683, %v1440, -inf
    %1694 = vmax.xlane.f32.xlu0 %v1693
    %v1695 = vpop.xlane.xlu0 %1694
    %v1696 = vsel %vm1683, %v1445, -inf
    %1697 = vmax.xlane.f32.xlu0 %v1696
    %v1698 = vpop.xlane.xlu0 %1697
    %v1699 = vsel %vm1683, %v1448, -inf
    %1700 = vmax.xlane.f32.xlu0 %v1699
    %v1701 = vpop.xlane.xlu0 %1700
    %v1702 = vsel %vm1683, %v1453, -inf
    %1703 = vmax.xlane.f32.xlu0 %v1702
    %v1704 = vpop.xlane.xlu0 %1703
    %v1705 = vsel %vm1683, %v1456, -inf
    %1706 = vmax.xlane.f32.xlu0 %v1705
    %v1707 = vpop.xlane.xlu0 %1706
    %v1708 = vsel %vm1683, %v1461, -inf
    %1709 = vmax.xlane.f32.xlu0 %v1708
    %v1710 = vpop.xlane.xlu0 %1709
    %v1711 = vsel %vm1683, %v1464, -inf
    %1712 = vmax.xlane.f32.xlu0 %v1711
    %v1713 = vpop.xlane.xlu0 %1712
    %v1714 = vsel %vm1683, %v1469, -inf
    %1715 = vmax.xlane.f32.xlu0 %v1714
    %v1716 = vpop.xlane.xlu0 %1715
    %v1717 = vsel %vm1683, %v1472, -inf
    %1718 = vmax.xlane.f32.xlu0 %v1717
    %v1719 = vpop.xlane.xlu0 %1718
    %v1720 = vsel %vm1683, %v1477, -inf
    %1721 = vmax.xlane.f32.xlu0 %v1720
    %v1722 = vpop.xlane.xlu0 %1721
    %v1723 = vsel %vm1683, %v1480, -inf
    %1724 = vmax.xlane.f32.xlu0 %v1723
    %v1725 = vpop.xlane.xlu0 %1724
    %v1726 = vsel %vm1683, %v1485, -inf
    %1727 = vmax.xlane.f32.xlu0 %v1726
    %v1728 = vpop.xlane.xlu0 %1727
    %v1729 = vsel %vm1683, %v1488, -inf
    %1730 = vmax.xlane.f32.xlu0 %v1729
    %v1731 = vpop.xlane.xlu0 %1730
    %v1732 = vsel %vm1683, %v1493, -inf
    %1733 = vmax.xlane.f32.xlu0 %v1732
    %v1734 = vpop.xlane.xlu0 %1733
    %v1735 = vsel %vm1683, %v1496, -inf
    %1736 = vmax.xlane.f32.xlu0 %v1735
    %v1737 = vpop.xlane.xlu0 %1736
    %v1738 = vsel %vm1683, %v1501, -inf
    %1739 = vmax.xlane.f32.xlu0 %v1738
    %v1740 = vpop.xlane.xlu0 %1739
    %v1741 = vsel %vm1683, %v1504, -inf
    %1742 = vmax.xlane.f32.xlu0 %v1741
    %v1743 = vpop.xlane.xlu0 %1742
    %v1744 = vsel %vm1683, %v1509, -inf
    %1745 = vmax.xlane.f32.xlu0 %v1744
    %v1746 = vpop.xlane.xlu0 %1745
    %v1747 = vsel %vm1683, %v1512, -inf
    %1748 = vmax.xlane.f32.xlu0 %v1747
    %v1749 = vpop.xlane.xlu0 %1748
    %v1750 = vsel %vm1683, %v1517, -inf
    %1751 = vmax.xlane.f32.xlu0 %v1750
    %v1752 = vpop.xlane.xlu0 %1751
    %v1753 = vsel %vm1683, %v1520, -inf
    %1754 = vmax.xlane.f32.xlu0 %v1753
    %v1755 = vpop.xlane.xlu0 %1754
    %v1756 = vsel %vm1683, %v1525, -inf
    %1757 = vmax.xlane.f32.xlu0 %v1756
    %v1758 = vpop.xlane.xlu0 %1757
    %v1759 = vsel %vm1683, %v1528, -inf
    %1760 = vmax.xlane.f32.xlu0 %v1759
    %v1761 = vpop.xlane.xlu0 %1760
    %v1762 = vsel %vm1683, %v1533, -inf
    %1763 = vmax.xlane.f32.xlu0 %v1762
    %v1764 = vpop.xlane.xlu0 %1763
    %v1765 = vsel %vm1683, %v1536, -inf
    %1766 = vmax.xlane.f32.xlu0 %v1765
    %v1767 = vpop.xlane.xlu0 %1766
    %v1768 = vsel %vm1683, %v1541, -inf
    %1769 = vmax.xlane.f32.xlu0 %v1768
    %v1770 = vpop.xlane.xlu0 %1769
    %v1771 = vsel %vm1683, %v1544, -inf
    %1772 = vmax.xlane.f32.xlu0 %v1771
    %v1773 = vpop.xlane.xlu0 %1772
    %v1774 = vsel %vm1683, %v1549, -inf
    %1775 = vmax.xlane.f32.xlu0 %v1774
    %v1776 = vpop.xlane.xlu0 %1775
    %v1777 = vsel %vm1683, %v1552, -inf
    %1778 = vmax.xlane.f32.xlu0 %v1777
    %v1779 = vpop.xlane.xlu0 %1778
    %v1780 = vsel %vm1683, %v1557, -inf
    %1781 = vmax.xlane.f32.xlu0 %v1780
    %v1782 = vpop.xlane.xlu0 %1781
    %v1783 = vsel %vm1683, %v1560, -inf
    %1784 = vmax.xlane.f32.xlu0 %v1783
    %v1785 = vpop.xlane.xlu0 %1784
    %v1786 = vsel %vm1683, %v1565, -inf
    %1787 = vmax.xlane.f32.xlu0 %v1786
    %v1788 = vpop.xlane.xlu0 %1787
    %v1789 = vsel %vm1683, %v1568, -inf
    %1790 = vmax.xlane.f32.xlu0 %v1789
    %v1791 = vpop.xlane.xlu0 %1790
    %v1792 = vsel %vm1683, %v1573, -inf
    %1793 = vmax.xlane.f32.xlu0 %v1792
    %v1794 = vpop.xlane.xlu0 %1793
    %v1795 = vsel %vm1683, %v1576, -inf
    %1796 = vmax.xlane.f32.xlu0 %v1795
    %v1797 = vpop.xlane.xlu0 %1796
    %v1798 = vsel %vm1683, %v1581, -inf
    %1799 = vmax.xlane.f32.xlu0 %v1798
    %v1800 = vpop.xlane.xlu0 %1799
    %v1801 = vsel %vm1683, %v1584, -inf
    %1802 = vmax.xlane.f32.xlu0 %v1801
    %v1803 = vpop.xlane.xlu0 %1802
    %v1804 = vsel %vm1683, %v1589, -inf
    %1805 = vmax.xlane.f32.xlu0 %v1804
    %v1806 = vpop.xlane.xlu0 %1805
    %v1807 = vsel %vm1683, %v1592, -inf
    %1808 = vmax.xlane.f32.xlu0 %v1807
    %v1809 = vpop.xlane.xlu0 %1808
    %v1810 = vsel %vm1683, %v1597, -inf
    %1811 = vmax.xlane.f32.xlu0 %v1810
    %v1812 = vpop.xlane.xlu0 %1811
    %v1813 = vsel %vm1683, %v1600, -inf
    %1814 = vmax.xlane.f32.xlu0 %v1813
    %v1815 = vpop.xlane.xlu0 %1814
    %v1816 = vsel %vm1683, %v1605, -inf
    %1817 = vmax.xlane.f32.xlu0 %v1816
    %v1818 = vpop.xlane.xlu0 %1817
    %v1819 = vsel %vm1683, %v1608, -inf
    %1820 = vmax.xlane.f32.xlu0 %v1819
    %v1821 = vpop.xlane.xlu0 %1820
    %v1822 = vsel %vm1683, %v1613, -inf
    %1823 = vmax.xlane.f32.xlu0 %v1822
    %v1824 = vpop.xlane.xlu0 %1823
    %v1825 = vsel %vm1683, %v1616, -inf
    %1826 = vmax.xlane.f32.xlu0 %v1825
    %v1827 = vpop.xlane.xlu0 %1826
    %v1828 = vsel %vm1683, %v1621, -inf
    %1829 = vmax.xlane.f32.xlu0 %v1828
    %v1830 = vpop.xlane.xlu0 %1829
    %v1831 = vsel %vm1683, %v1624, -inf
    %1832 = vmax.xlane.f32.xlu0 %v1831
    %v1833 = vpop.xlane.xlu0 %1832
    %v1834 = vsel %vm1683, %v1629, -inf
    %1835 = vmax.xlane.f32.xlu0 %v1834
    %v1836 = vpop.xlane.xlu0 %1835
    %v1837 = vsel %vm1683, %v1632, -inf
    %1838 = vmax.xlane.f32.xlu0 %v1837
    %v1839 = vpop.xlane.xlu0 %1838
    %v1840 = vsel %vm1683, %v1637, -inf
    %1841 = vmax.xlane.f32.xlu0 %v1840
    %v1842 = vpop.xlane.xlu0 %1841
    %v1843 = vsel %vm1683, %v1640, -inf
    %1844 = vmax.xlane.f32.xlu0 %v1843
    %v1845 = vpop.xlane.xlu0 %1844
    %v1846 = vsel %vm1683, %v1645, -inf
    %1847 = vmax.xlane.f32.xlu0 %v1846
    %v1848 = vpop.xlane.xlu0 %1847
    %v1849 = vsel %vm1683, %v1648, -inf
    %1850 = vmax.xlane.f32.xlu0 %v1849
    %v1851 = vpop.xlane.xlu0 %1850
    %v1852 = vsel %vm1683, %v1653, -inf
    %1853 = vmax.xlane.f32.xlu0 %v1852
    %v1854 = vpop.xlane.xlu0 %1853
    %v1855 = vsel %vm1683, %v1656, -inf
    %1856 = vmax.xlane.f32.xlu0 %v1855
    %v1857 = vpop.xlane.xlu0 %1856
    %v1858 = vsel %vm1683, %v1661, -inf
    %1859 = vmax.xlane.f32.xlu0 %v1858
    %v1860 = vpop.xlane.xlu0 %1859
    %v1861 = vsel %vm1683, %v1664, -inf
    %1862 = vmax.xlane.f32.xlu0 %v1861
    %v1863 = vpop.xlane.xlu0 %1862
    %v1864 = vsel %vm1683, %v1669, -inf
    %1865 = vmax.xlane.f32.xlu0 %v1864
    %v1866 = vpop.xlane.xlu0 %1865
    %v1867 = vsel %vm1683, %v1672, -inf
    %1868 = vmax.xlane.f32.xlu0 %v1867
    %v1869 = vpop.xlane.xlu0 %1868
    %v1870 = vsel %vm1683, %v1677, -inf
    %1871 = vmax.xlane.f32.xlu0 %v1870
    %v1872 = vpop.xlane.xlu0 %1871
    %v1873 = vsel %vm1683, %v1680, -inf
    %1874 = vmax.xlane.f32.xlu0 %v1873
    %v1875 = vpop.xlane.xlu0 %1874
    %v1876 = vsub.f32 %v1429, %v1686
    %v1877 = vsub.f32 %v1432, %v1689
    %v1878 = vsub.f32 %v1437, %v1692
    %v1879 = vsub.f32 %v1440, %v1695
    %v1880 = vsub.f32 %v1445, %v1698
    %v1881 = vsub.f32 %v1448, %v1701
    %v1882 = vsub.f32 %v1453, %v1704
    %v1883 = vsub.f32 %v1456, %v1707
    %v1884 = vsub.f32 %v1461, %v1710
    %v1885 = vsub.f32 %v1464, %v1713
    %v1886 = vsub.f32 %v1469, %v1716
    %v1887 = vsub.f32 %v1472, %v1719
    %v1888 = vsub.f32 %v1477, %v1722
    %v1889 = vsub.f32 %v1480, %v1725
    %v1890 = vsub.f32 %v1485, %v1728
    %v1891 = vsub.f32 %v1488, %v1731
    %v1892 = vsub.f32 %v1493, %v1734
    %v1893 = vsub.f32 %v1496, %v1737
    %v1894 = vsub.f32 %v1501, %v1740
    %v1895 = vsub.f32 %v1504, %v1743
    %v1896 = vsub.f32 %v1509, %v1746
    %v1897 = vsub.f32 %v1512, %v1749
    %v1898 = vsub.f32 %v1517, %v1752
    %v1899 = vsub.f32 %v1520, %v1755
    %v1900 = vsub.f32 %v1525, %v1758
    %v1901 = vsub.f32 %v1528, %v1761
    %v1902 = vsub.f32 %v1533, %v1764
    %v1903 = vsub.f32 %v1536, %v1767
    %v1904 = vsub.f32 %v1541, %v1770
    %v1905 = vsub.f32 %v1544, %v1773
    %v1906 = vsub.f32 %v1549, %v1776
    %v1907 = vsub.f32 %v1552, %v1779
    %v1908 = vsub.f32 %v1557, %v1782
    %v1909 = vsub.f32 %v1560, %v1785
    %v1910 = vsub.f32 %v1565, %v1788
    %v1911 = vsub.f32 %v1568, %v1791
    %v1912 = vsub.f32 %v1573, %v1794
    %v1913 = vsub.f32 %v1576, %v1797
    %v1914 = vsub.f32 %v1581, %v1800
    %v1915 = vsub.f32 %v1584, %v1803
    %v1916 = vsub.f32 %v1589, %v1806
    %v1917 = vsub.f32 %v1592, %v1809
    %v1918 = vsub.f32 %v1597, %v1812
    %v1919 = vsub.f32 %v1600, %v1815
    %v1920 = vsub.f32 %v1605, %v1818
    %v1921 = vsub.f32 %v1608, %v1821
    %v1922 = vsub.f32 %v1613, %v1824
    %v1923 = vsub.f32 %v1616, %v1827
    %v1924 = vsub.f32 %v1621, %v1830
    %v1925 = vsub.f32 %v1624, %v1833
    %v1926 = vsub.f32 %v1629, %v1836
    %v1927 = vsub.f32 %v1632, %v1839
    %v1928 = vsub.f32 %v1637, %v1842
    %v1929 = vsub.f32 %v1640, %v1845
    %v1930 = vsub.f32 %v1645, %v1848
    %v1931 = vsub.f32 %v1648, %v1851
    %v1932 = vsub.f32 %v1653, %v1854
    %v1933 = vsub.f32 %v1656, %v1857
    %v1934 = vsub.f32 %v1661, %v1860
    %v1935 = vsub.f32 %v1664, %v1863
    %v1936 = vsub.f32 %v1669, %v1866
    %v1937 = vsub.f32 %v1672, %v1869
    %v1938 = vsub.f32 %v1677, %v1872
    %v1939 = vsub.f32 %v1680, %v1875
    %v1940 = vmul.f32 %v1876, 1.442695
    %v1941 = vpow.pop %v1940
    %v1942 = vmul.f32 %v1877, 1.442695
    %v1943 = vpow.pop %v1942
    %v1944 = vmul.f32 %v1878, 1.442695
    %v1945 = vpow.pop %v1944
    %v1946 = vmul.f32 %v1879, 1.442695
    %v1947 = vpow.pop %v1946
    %v1948 = vmul.f32 %v1880, 1.442695
    %v1949 = vpow.pop %v1948
    %v1950 = vmul.f32 %v1881, 1.442695
    %v1951 = vpow.pop %v1950
    %v1952 = vmul.f32 %v1882, 1.442695
    %v1953 = vpow.pop %v1952
    %v1954 = vmul.f32 %v1883, 1.442695
    %v1955 = vpow.pop %v1954
    %v1956 = vmul.f32 %v1884, 1.442695
    %v1957 = vpow.pop %v1956
    %v1958 = vmul.f32 %v1885, 1.442695
    %v1959 = vpow.pop %v1958
    %v1960 = vmul.f32 %v1886, 1.442695
    %v1961 = vpow.pop %v1960
    %v1962 = vmul.f32 %v1887, 1.442695
    %v1963 = vpow.pop %v1962
    %v1964 = vmul.f32 %v1888, 1.442695
    %v1965 = vpow.pop %v1964
    %v1966 = vmul.f32 %v1889, 1.442695
    %v1967 = vpow.pop %v1966
    %v1968 = vmul.f32 %v1890, 1.442695
    %v1969 = vpow.pop %v1968
    %v1970 = vmul.f32 %v1891, 1.442695
    %v1971 = vpow.pop %v1970
    %v1972 = vmul.f32 %v1892, 1.442695
    %v1973 = vpow.pop %v1972
    %v1974 = vmul.f32 %v1893, 1.442695
    %v1975 = vpow.pop %v1974
    %v1976 = vmul.f32 %v1894, 1.442695
    %v1977 = vpow.pop %v1976
    %v1978 = vmul.f32 %v1895, 1.442695
    %v1979 = vpow.pop %v1978
    %v1980 = vmul.f32 %v1896, 1.442695
    %v1981 = vpow.pop %v1980
    %v1982 = vmul.f32 %v1897, 1.442695
    %v1983 = vpow.pop %v1982
    %v1984 = vmul.f32 %v1898, 1.442695
    %v1985 = vpow.pop %v1984
    %v1986 = vmul.f32 %v1899, 1.442695
    %v1987 = vpow.pop %v1986
    %v1988 = vmul.f32 %v1900, 1.442695
    %v1989 = vpow.pop %v1988
    %v1990 = vmul.f32 %v1901, 1.442695
    %v1991 = vpow.pop %v1990
    %v1992 = vmul.f32 %v1902, 1.442695
    %v1993 = vpow.pop %v1992
    %v1994 = vmul.f32 %v1903, 1.442695
    %v1995 = vpow.pop %v1994
    %v1996 = vmul.f32 %v1904, 1.442695
    %v1997 = vpow.pop %v1996
    %v1998 = vmul.f32 %v1905, 1.442695
    %v1999 = vpow.pop %v1998
    %v2000 = vmul.f32 %v1906, 1.442695
    %v2001 = vpow.pop %v2000
    %v2002 = vmul.f32 %v1907, 1.442695
    %v2003 = vpow.pop %v2002
    %v2004 = vmul.f32 %v1908, 1.442695
    %v2005 = vpow.pop %v2004
    %v2006 = vmul.f32 %v1909, 1.442695
    %v2007 = vpow.pop %v2006
    %v2008 = vmul.f32 %v1910, 1.442695
    %v2009 = vpow.pop %v2008
    %v2010 = vmul.f32 %v1911, 1.442695
    %v2011 = vpow.pop %v2010
    %v2012 = vmul.f32 %v1912, 1.442695
    %v2013 = vpow.pop %v2012
    %v2014 = vmul.f32 %v1913, 1.442695
    %v2015 = vpow.pop %v2014
    %v2016 = vmul.f32 %v1914, 1.442695
    %v2017 = vpow.pop %v2016
    %v2018 = vmul.f32 %v1915, 1.442695
    %v2019 = vpow.pop %v2018
    %v2020 = vmul.f32 %v1916, 1.442695
    %v2021 = vpow.pop %v2020
    %v2022 = vmul.f32 %v1917, 1.442695
    %v2023 = vpow.pop %v2022
    %v2024 = vmul.f32 %v1918, 1.442695
    %v2025 = vpow.pop %v2024
    %v2026 = vmul.f32 %v1919, 1.442695
    %v2027 = vpow.pop %v2026
    %v2028 = vmul.f32 %v1920, 1.442695
    %v2029 = vpow.pop %v2028
    %v2030 = vmul.f32 %v1921, 1.442695
    %v2031 = vpow.pop %v2030
    %v2032 = vmul.f32 %v1922, 1.442695
    %v2033 = vpow.pop %v2032
    %v2034 = vmul.f32 %v1923, 1.442695
    %v2035 = vpow.pop %v2034
    %v2036 = vmul.f32 %v1924, 1.442695
    %v2037 = vpow.pop %v2036
    %v2038 = vmul.f32 %v1925, 1.442695
    %v2039 = vpow.pop %v2038
    %v2040 = vmul.f32 %v1926, 1.442695
    %v2041 = vpow.pop %v2040
    %v2042 = vmul.f32 %v1927, 1.442695
    %v2043 = vpow.pop %v2042
    %v2044 = vmul.f32 %v1928, 1.442695
    %v2045 = vpow.pop %v2044
    %v2046 = vmul.f32 %v1929, 1.442695
    %v2047 = vpow.pop %v2046
    %v2048 = vmul.f32 %v1930, 1.442695
    %v2049 = vpow.pop %v2048
    %v2050 = vmul.f32 %v1931, 1.442695
    %v2051 = vpow.pop %v2050
    %v2052 = vmul.f32 %v1932, 1.442695
    %v2053 = vpow.pop %v2052
    %v2054 = vmul.f32 %v1933, 1.442695
    %v2055 = vpow.pop %v2054
    %v2056 = vmul.f32 %v1934, 1.442695
    %v2057 = vpow.pop %v2056
    %v2058 = vmul.f32 %v1935, 1.442695
    %v2059 = vpow.pop %v2058
    %v2060 = vmul.f32 %v1936, 1.442695
    %v2061 = vpow.pop %v2060
    %v2062 = vmul.f32 %v1937, 1.442695
    %v2063 = vpow.pop %v2062
    %v2064 = vmul.f32 %v1938, 1.442695
    %v2065 = vpow.pop %v2064
    %v2066 = vmul.f32 %v1939, 1.442695
    %v2067 = vpow.pop %v2066
    %v2068 = vsel %vm1683, %v1941, 0.0
    %2069 = vadd.xlane.f32.xlu0 %v2068
    %v2070 = vpop.xlane.xlu0 %2069
    %v2071 = vsel %vm1683, %v1943, 0.0
    %2072 = vadd.xlane.f32.xlu0 %v2071
    %v2073 = vpop.xlane.xlu0 %2072
    %v2074 = vsel %vm1683, %v1945, 0.0
    %2075 = vadd.xlane.f32.xlu0 %v2074
    %v2076 = vpop.xlane.xlu0 %2075
    %v2077 = vsel %vm1683, %v1947, 0.0
    %2078 = vadd.xlane.f32.xlu0 %v2077
    %v2079 = vpop.xlane.xlu0 %2078
    %v2080 = vsel %vm1683, %v1949, 0.0
    %2081 = vadd.xlane.f32.xlu0 %v2080
    %v2082 = vpop.xlane.xlu0 %2081
    %v2083 = vsel %vm1683, %v1951, 0.0
    %2084 = vadd.xlane.f32.xlu0 %v2083
    %v2085 = vpop.xlane.xlu0 %2084
    %v2086 = vsel %vm1683, %v1953, 0.0
    %2087 = vadd.xlane.f32.xlu0 %v2086
    %v2088 = vpop.xlane.xlu0 %2087
    %v2089 = vsel %vm1683, %v1955, 0.0
    %2090 = vadd.xlane.f32.xlu0 %v2089
    %v2091 = vpop.xlane.xlu0 %2090
    %v2092 = vsel %vm1683, %v1957, 0.0
    %2093 = vadd.xlane.f32.xlu0 %v2092
    %v2094 = vpop.xlane.xlu0 %2093
    %v2095 = vsel %vm1683, %v1959, 0.0
    %2096 = vadd.xlane.f32.xlu0 %v2095
    %v2097 = vpop.xlane.xlu0 %2096
    %v2098 = vsel %vm1683, %v1961, 0.0
    %2099 = vadd.xlane.f32.xlu0 %v2098
    %v2100 = vpop.xlane.xlu0 %2099
    %v2101 = vsel %vm1683, %v1963, 0.0
    %2102 = vadd.xlane.f32.xlu0 %v2101
    %v2103 = vpop.xlane.xlu0 %2102
    %v2104 = vsel %vm1683, %v1965, 0.0
    %2105 = vadd.xlane.f32.xlu0 %v2104
    %v2106 = vpop.xlane.xlu0 %2105
    %v2107 = vsel %vm1683, %v1967, 0.0
    %2108 = vadd.xlane.f32.xlu0 %v2107
    %v2109 = vpop.xlane.xlu0 %2108
    %v2110 = vsel %vm1683, %v1969, 0.0
    %2111 = vadd.xlane.f32.xlu0 %v2110
    %v2112 = vpop.xlane.xlu0 %2111
    %v2113 = vsel %vm1683, %v1971, 0.0
    %2114 = vadd.xlane.f32.xlu0 %v2113
    %v2115 = vpop.xlane.xlu0 %2114
    %v2116 = vsel %vm1683, %v1973, 0.0
    %2117 = vadd.xlane.f32.xlu0 %v2116
    %v2118 = vpop.xlane.xlu0 %2117
    %v2119 = vsel %vm1683, %v1975, 0.0
    %2120 = vadd.xlane.f32.xlu0 %v2119
    %v2121 = vpop.xlane.xlu0 %2120
    %v2122 = vsel %vm1683, %v1977, 0.0
    %2123 = vadd.xlane.f32.xlu0 %v2122
    %v2124 = vpop.xlane.xlu0 %2123
    %v2125 = vsel %vm1683, %v1979, 0.0
    %2126 = vadd.xlane.f32.xlu0 %v2125
    %v2127 = vpop.xlane.xlu0 %2126
    %v2128 = vsel %vm1683, %v1981, 0.0
    %2129 = vadd.xlane.f32.xlu0 %v2128
    %v2130 = vpop.xlane.xlu0 %2129
    %v2131 = vsel %vm1683, %v1983, 0.0
    %2132 = vadd.xlane.f32.xlu0 %v2131
    %v2133 = vpop.xlane.xlu0 %2132
    %v2134 = vsel %vm1683, %v1985, 0.0
    %2135 = vadd.xlane.f32.xlu0 %v2134
    %v2136 = vpop.xlane.xlu0 %2135
    %v2137 = vsel %vm1683, %v1987, 0.0
    %2138 = vadd.xlane.f32.xlu0 %v2137
    %v2139 = vpop.xlane.xlu0 %2138
    %v2140 = vsel %vm1683, %v1989, 0.0
    %2141 = vadd.xlane.f32.xlu0 %v2140
    %v2142 = vpop.xlane.xlu0 %2141
    %v2143 = vsel %vm1683, %v1991, 0.0
    %2144 = vadd.xlane.f32.xlu0 %v2143
    %v2145 = vpop.xlane.xlu0 %2144
    %v2146 = vsel %vm1683, %v1993, 0.0
    %2147 = vadd.xlane.f32.xlu0 %v2146
    %v2148 = vpop.xlane.xlu0 %2147
    %v2149 = vsel %vm1683, %v1995, 0.0
    %2150 = vadd.xlane.f32.xlu0 %v2149
    %v2151 = vpop.xlane.xlu0 %2150
    %v2152 = vsel %vm1683, %v1997, 0.0
    %2153 = vadd.xlane.f32.xlu0 %v2152
    %v2154 = vpop.xlane.xlu0 %2153
    %v2155 = vsel %vm1683, %v1999, 0.0
    %2156 = vadd.xlane.f32.xlu0 %v2155
    %v2157 = vpop.xlane.xlu0 %2156
    %v2158 = vsel %vm1683, %v2001, 0.0
    %2159 = vadd.xlane.f32.xlu0 %v2158
    %v2160 = vpop.xlane.xlu0 %2159
    %v2161 = vsel %vm1683, %v2003, 0.0
    %2162 = vadd.xlane.f32.xlu0 %v2161
    %v2163 = vpop.xlane.xlu0 %2162
    %v2164 = vsel %vm1683, %v2005, 0.0
    %2165 = vadd.xlane.f32.xlu0 %v2164
    %v2166 = vpop.xlane.xlu0 %2165
    %v2167 = vsel %vm1683, %v2007, 0.0
    %2168 = vadd.xlane.f32.xlu0 %v2167
    %v2169 = vpop.xlane.xlu0 %2168
    %v2170 = vsel %vm1683, %v2009, 0.0
    %2171 = vadd.xlane.f32.xlu0 %v2170
    %v2172 = vpop.xlane.xlu0 %2171
    %v2173 = vsel %vm1683, %v2011, 0.0
    %2174 = vadd.xlane.f32.xlu0 %v2173
    %v2175 = vpop.xlane.xlu0 %2174
    %v2176 = vsel %vm1683, %v2013, 0.0
    %2177 = vadd.xlane.f32.xlu0 %v2176
    %v2178 = vpop.xlane.xlu0 %2177
    %v2179 = vsel %vm1683, %v2015, 0.0
    %2180 = vadd.xlane.f32.xlu0 %v2179
    %v2181 = vpop.xlane.xlu0 %2180
    %v2182 = vsel %vm1683, %v2017, 0.0
    %2183 = vadd.xlane.f32.xlu0 %v2182
    %v2184 = vpop.xlane.xlu0 %2183
    %v2185 = vsel %vm1683, %v2019, 0.0
    %2186 = vadd.xlane.f32.xlu0 %v2185
    %v2187 = vpop.xlane.xlu0 %2186
    %v2188 = vsel %vm1683, %v2021, 0.0
    %2189 = vadd.xlane.f32.xlu0 %v2188
    %v2190 = vpop.xlane.xlu0 %2189
    %v2191 = vsel %vm1683, %v2023, 0.0
    %2192 = vadd.xlane.f32.xlu0 %v2191
    %v2193 = vpop.xlane.xlu0 %2192
    %v2194 = vsel %vm1683, %v2025, 0.0
    %2195 = vadd.xlane.f32.xlu0 %v2194
    %v2196 = vpop.xlane.xlu0 %2195
    %v2197 = vsel %vm1683, %v2027, 0.0
    %2198 = vadd.xlane.f32.xlu0 %v2197
    %v2199 = vpop.xlane.xlu0 %2198
    %v2200 = vsel %vm1683, %v2029, 0.0
    %2201 = vadd.xlane.f32.xlu0 %v2200
    %v2202 = vpop.xlane.xlu0 %2201
    %v2203 = vsel %vm1683, %v2031, 0.0
    %2204 = vadd.xlane.f32.xlu0 %v2203
    %v2205 = vpop.xlane.xlu0 %2204
    %v2206 = vsel %vm1683, %v2033, 0.0
    %2207 = vadd.xlane.f32.xlu0 %v2206
    %v2208 = vpop.xlane.xlu0 %2207
    %v2209 = vsel %vm1683, %v2035, 0.0
    %2210 = vadd.xlane.f32.xlu0 %v2209
    %v2211 = vpop.xlane.xlu0 %2210
    %v2212 = vsel %vm1683, %v2037, 0.0
    %2213 = vadd.xlane.f32.xlu0 %v2212
    %v2214 = vpop.xlane.xlu0 %2213
    %v2215 = vsel %vm1683, %v2039, 0.0
    %2216 = vadd.xlane.f32.xlu0 %v2215
    %v2217 = vpop.xlane.xlu0 %2216
    %v2218 = vsel %vm1683, %v2041, 0.0
    %2219 = vadd.xlane.f32.xlu0 %v2218
    %v2220 = vpop.xlane.xlu0 %2219
    %v2221 = vsel %vm1683, %v2043, 0.0
    %2222 = vadd.xlane.f32.xlu0 %v2221
    %v2223 = vpop.xlane.xlu0 %2222
    %v2224 = vsel %vm1683, %v2045, 0.0
    %2225 = vadd.xlane.f32.xlu0 %v2224
    %v2226 = vpop.xlane.xlu0 %2225
    %v2227 = vsel %vm1683, %v2047, 0.0
    %2228 = vadd.xlane.f32.xlu0 %v2227
    %v2229 = vpop.xlane.xlu0 %2228
    %v2230 = vsel %vm1683, %v2049, 0.0
    %2231 = vadd.xlane.f32.xlu0 %v2230
    %v2232 = vpop.xlane.xlu0 %2231
    %v2233 = vsel %vm1683, %v2051, 0.0
    %2234 = vadd.xlane.f32.xlu0 %v2233
    %v2235 = vpop.xlane.xlu0 %2234
    %v2236 = vsel %vm1683, %v2053, 0.0
    %2237 = vadd.xlane.f32.xlu0 %v2236
    %v2238 = vpop.xlane.xlu0 %2237
    %v2239 = vsel %vm1683, %v2055, 0.0
    %2240 = vadd.xlane.f32.xlu0 %v2239
    %v2241 = vpop.xlane.xlu0 %2240
    %v2242 = vsel %vm1683, %v2057, 0.0
    %2243 = vadd.xlane.f32.xlu0 %v2242
    %v2244 = vpop.xlane.xlu0 %2243
    %v2245 = vsel %vm1683, %v2059, 0.0
    %2246 = vadd.xlane.f32.xlu0 %v2245
    %v2247 = vpop.xlane.xlu0 %2246
    %v2248 = vsel %vm1683, %v2061, 0.0
    %2249 = vadd.xlane.f32.xlu0 %v2248
    %v2250 = vpop.xlane.xlu0 %2249
    %v2251 = vsel %vm1683, %v2063, 0.0
    %2252 = vadd.xlane.f32.xlu0 %v2251
    %v2253 = vpop.xlane.xlu0 %2252
    %v2254 = vsel %vm1683, %v2065, 0.0
    %2255 = vadd.xlane.f32.xlu0 %v2254
    %v2256 = vpop.xlane.xlu0 %2255
    %v2257 = vsel %vm1683, %v2067, 0.0
    %2258 = vadd.xlane.f32.xlu0 %v2257
    %v2259 = vpop.xlane.xlu0 %2258
    %v2260 = vrcp.pop %v2070
    %v2261 = vmul.f32 %v1941, %v2260
    %v2262 = vrcp.pop %v2073
    %v2263 = vmul.f32 %v1943, %v2262
    %v2264 = vrcp.pop %v2076
    %v2265 = vmul.f32 %v1945, %v2264
    %v2266 = vrcp.pop %v2079
    %v2267 = vmul.f32 %v1947, %v2266
    %v2268 = vrcp.pop %v2082
    %v2269 = vmul.f32 %v1949, %v2268
    %v2270 = vrcp.pop %v2085
    %v2271 = vmul.f32 %v1951, %v2270
    %v2272 = vrcp.pop %v2088
    %v2273 = vmul.f32 %v1953, %v2272
    %v2274 = vrcp.pop %v2091
    %v2275 = vmul.f32 %v1955, %v2274
    %v2276 = vrcp.pop %v2094
    %v2277 = vmul.f32 %v1957, %v2276
    %v2278 = vrcp.pop %v2097
    %v2279 = vmul.f32 %v1959, %v2278
    %v2280 = vrcp.pop %v2100
    %v2281 = vmul.f32 %v1961, %v2280
    %v2282 = vrcp.pop %v2103
    %v2283 = vmul.f32 %v1963, %v2282
    %v2284 = vrcp.pop %v2106
    %v2285 = vmul.f32 %v1965, %v2284
    %v2286 = vrcp.pop %v2109
    %v2287 = vmul.f32 %v1967, %v2286
    %v2288 = vrcp.pop %v2112
    %v2289 = vmul.f32 %v1969, %v2288
    %v2290 = vrcp.pop %v2115
    %v2291 = vmul.f32 %v1971, %v2290
    %v2292 = vrcp.pop %v2118
    %v2293 = vmul.f32 %v1973, %v2292
    %v2294 = vrcp.pop %v2121
    %v2295 = vmul.f32 %v1975, %v2294
    %v2296 = vrcp.pop %v2124
    %v2297 = vmul.f32 %v1977, %v2296
    %v2298 = vrcp.pop %v2127
    %v2299 = vmul.f32 %v1979, %v2298
    %v2300 = vrcp.pop %v2130
    %v2301 = vmul.f32 %v1981, %v2300
    %v2302 = vrcp.pop %v2133
    %v2303 = vmul.f32 %v1983, %v2302
    %v2304 = vrcp.pop %v2136
    %v2305 = vmul.f32 %v1985, %v2304
    %v2306 = vrcp.pop %v2139
    %v2307 = vmul.f32 %v1987, %v2306
    %v2308 = vrcp.pop %v2142
    %v2309 = vmul.f32 %v1989, %v2308
    %v2310 = vrcp.pop %v2145
    %v2311 = vmul.f32 %v1991, %v2310
    %v2312 = vrcp.pop %v2148
    %v2313 = vmul.f32 %v1993, %v2312
    %v2314 = vrcp.pop %v2151
    %v2315 = vmul.f32 %v1995, %v2314
    %v2316 = vrcp.pop %v2154
    %v2317 = vmul.f32 %v1997, %v2316
    %v2318 = vrcp.pop %v2157
    %v2319 = vmul.f32 %v1999, %v2318
    %v2320 = vrcp.pop %v2160
    %v2321 = vmul.f32 %v2001, %v2320
    %v2322 = vrcp.pop %v2163
    %v2323 = vmul.f32 %v2003, %v2322
    %v2324 = vrcp.pop %v2166
    %v2325 = vmul.f32 %v2005, %v2324
    %v2326 = vrcp.pop %v2169
    %v2327 = vmul.f32 %v2007, %v2326
    %v2328 = vrcp.pop %v2172
    %v2329 = vmul.f32 %v2009, %v2328
    %v2330 = vrcp.pop %v2175
    %v2331 = vmul.f32 %v2011, %v2330
    %v2332 = vrcp.pop %v2178
    %v2333 = vmul.f32 %v2013, %v2332
    %v2334 = vrcp.pop %v2181
    %v2335 = vmul.f32 %v2015, %v2334
    %v2336 = vrcp.pop %v2184
    %v2337 = vmul.f32 %v2017, %v2336
    %v2338 = vrcp.pop %v2187
    %v2339 = vmul.f32 %v2019, %v2338
    %v2340 = vrcp.pop %v2190
    %v2341 = vmul.f32 %v2021, %v2340
    %v2342 = vrcp.pop %v2193
    %v2343 = vmul.f32 %v2023, %v2342
    %v2344 = vrcp.pop %v2196
    %v2345 = vmul.f32 %v2025, %v2344
    %v2346 = vrcp.pop %v2199
    %v2347 = vmul.f32 %v2027, %v2346
    %v2348 = vrcp.pop %v2202
    %v2349 = vmul.f32 %v2029, %v2348
    %v2350 = vrcp.pop %v2205
    %v2351 = vmul.f32 %v2031, %v2350
    %v2352 = vrcp.pop %v2208
    %v2353 = vmul.f32 %v2033, %v2352
    %v2354 = vrcp.pop %v2211
    %v2355 = vmul.f32 %v2035, %v2354
    %v2356 = vrcp.pop %v2214
    %v2357 = vmul.f32 %v2037, %v2356
    %v2358 = vrcp.pop %v2217
    %v2359 = vmul.f32 %v2039, %v2358
    %v2360 = vrcp.pop %v2220
    %v2361 = vmul.f32 %v2041, %v2360
    %v2362 = vrcp.pop %v2223
    %v2363 = vmul.f32 %v2043, %v2362
    %v2364 = vrcp.pop %v2226
    %v2365 = vmul.f32 %v2045, %v2364
    %v2366 = vrcp.pop %v2229
    %v2367 = vmul.f32 %v2047, %v2366
    %v2368 = vrcp.pop %v2232
    %v2369 = vmul.f32 %v2049, %v2368
    %v2370 = vrcp.pop %v2235
    %v2371 = vmul.f32 %v2051, %v2370
    %v2372 = vrcp.pop %v2238
    %v2373 = vmul.f32 %v2053, %v2372
    %v2374 = vrcp.pop %v2241
    %v2375 = vmul.f32 %v2055, %v2374
    %v2376 = vrcp.pop %v2244
    %v2377 = vmul.f32 %v2057, %v2376
    %v2378 = vrcp.pop %v2247
    %v2379 = vmul.f32 %v2059, %v2378
    %v2380 = vrcp.pop %v2250
    %v2381 = vmul.f32 %v2061, %v2380
    %v2382 = vrcp.pop %v2253
    %v2383 = vmul.f32 %v2063, %v2382
    %v2384 = vrcp.pop %v2256
    %v2385 = vmul.f32 %v2065, %v2384
    %v2386 = vrcp.pop %v2259
    %v2387 = vmul.f32 %v2067, %v2386
    %2388 = vst.msk [vmem:[%s7] sm:$0xff] %vm1683, %v2261
    %2389 = vst.msk [vmem:[%s7 + $0x8] sm:$0xff] %vm1683, %v2263
    %2390 = vst.msk [vmem:[%s7 + $0x10] sm:$0xff] %vm1683, %v2265
    %2391 = vst.msk [vmem:[%s7 + $0x18] sm:$0xff] %vm1683, %v2267
    %2392 = vst.msk [vmem:[%s7 + $0x20] sm:$0xff] %vm1683, %v2269
    %2393 = vst.msk [vmem:[%s7 + $0x28] sm:$0xff] %vm1683, %v2271
    %2394 = vst.msk [vmem:[%s7 + $0x30] sm:$0xff] %vm1683, %v2273
    %2395 = vst.msk [vmem:[%s7 + $0x38] sm:$0xff] %vm1683, %v2275
    %2396 = vst.msk [vmem:[%s7 + $0x40] sm:$0xff] %vm1683, %v2277
    %2397 = vst.msk [vmem:[%s7 + $0x48] sm:$0xff] %vm1683, %v2279
    %2398 = vst.msk [vmem:[%s7 + $0x50] sm:$0xff] %vm1683, %v2281
    %2399 = vst.msk [vmem:[%s7 + $0x58] sm:$0xff] %vm1683, %v2283
    %2400 = vst.msk [vmem:[%s7 + $0x60] sm:$0xff] %vm1683, %v2285
    %2401 = vst.msk [vmem:[%s7 + $0x68] sm:$0xff] %vm1683, %v2287
    %2402 = vst.msk [vmem:[%s7 + $0x70] sm:$0xff] %vm1683, %v2289
    %2403 = vst.msk [vmem:[%s7 + $0x78] sm:$0xff] %vm1683, %v2291
    %2404 = vst.msk [vmem:[%s7 + $0x80] sm:$0xff] %vm1683, %v2293
    %2405 = vst.msk [vmem:[%s7 + $0x88] sm:$0xff] %vm1683, %v2295
    %2406 = vst.msk [vmem:[%s7 + $0x90] sm:$0xff] %vm1683, %v2297
    %2407 = vst.msk [vmem:[%s7 + $0x98] sm:$0xff] %vm1683, %v2299
    %2408 = vst.msk [vmem:[%s7 + $0xa0] sm:$0xff] %vm1683, %v2301
    %2409 = vst.msk [vmem:[%s7 + $0xa8] sm:$0xff] %vm1683, %v2303
    %2410 = vst.msk [vmem:[%s7 + $0xb0] sm:$0xff] %vm1683, %v2305
    %2411 = vst.msk [vmem:[%s7 + $0xb8] sm:$0xff] %vm1683, %v2307
    %2412 = vst.msk [vmem:[%s7 + $0xc0] sm:$0xff] %vm1683, %v2309
    %2413 = vst.msk [vmem:[%s7 + $0xc8] sm:$0xff] %vm1683, %v2311
    %2414 = vst.msk [vmem:[%s7 + $0xd0] sm:$0xff] %vm1683, %v2313
    %2415 = vst.msk [vmem:[%s7 + $0xd8] sm:$0xff] %vm1683, %v2315
    %2416 = vst.msk [vmem:[%s7 + $0xe0] sm:$0xff] %vm1683, %v2317
    %2417 = vst.msk [vmem:[%s7 + $0xe8] sm:$0xff] %vm1683, %v2319
    %2418 = vst.msk [vmem:[%s7 + $0xf0] sm:$0xff] %vm1683, %v2321
    %2419 = vst.msk [vmem:[%s7 + $0xf8] sm:$0xff] %vm1683, %v2323
    %2420 = vst.msk [vmem:[%s7 + $0x100] sm:$0xff] %vm1683, %v2325
    %2421 = vst.msk [vmem:[%s7 + $0x108] sm:$0xff] %vm1683, %v2327
    %2422 = vst.msk [vmem:[%s7 + $0x110] sm:$0xff] %vm1683, %v2329
    %2423 = vst.msk [vmem:[%s7 + $0x118] sm:$0xff] %vm1683, %v2331
    %2424 = vst.msk [vmem:[%s7 + $0x120] sm:$0xff] %vm1683, %v2333
    %2425 = vst.msk [vmem:[%s7 + $0x128] sm:$0xff] %vm1683, %v2335
    %2426 = vst.msk [vmem:[%s7 + $0x130] sm:$0xff] %vm1683, %v2337
    %2427 = vst.msk [vmem:[%s7 + $0x138] sm:$0xff] %vm1683, %v2339
    %2428 = vst.msk [vmem:[%s7 + $0x140] sm:$0xff] %vm1683, %v2341
    %2429 = vst.msk [vmem:[%s7 + $0x148] sm:$0xff] %vm1683, %v2343
    %2430 = vst.msk [vmem:[%s7 + $0x150] sm:$0xff] %vm1683, %v2345
    %2431 = vst.msk [vmem:[%s7 + $0x158] sm:$0xff] %vm1683, %v2347
    %2432 = vst.msk [vmem:[%s7 + $0x160] sm:$0xff] %vm1683, %v2349
    %2433 = vst.msk [vmem:[%s7 + $0x168] sm:$0xff] %vm1683, %v2351
    %2434 = vst.msk [vmem:[%s7 + $0x170] sm:$0xff] %vm1683, %v2353
    %2435 = vst.msk [vmem:[%s7 + $0x178] sm:$0xff] %vm1683, %v2355
    %2436 = vst.msk [vmem:[%s7 + $0x180] sm:$0xff] %vm1683, %v2357
    %2437 = vst.msk [vmem:[%s7 + $0x188] sm:$0xff] %vm1683, %v2359
    %2438 = vst.msk [vmem:[%s7 + $0x190] sm:$0xff] %vm1683, %v2361
    %2439 = vst.msk [vmem:[%s7 + $0x198] sm:$0xff] %vm1683, %v2363
    %2440 = vst.msk [vmem:[%s7 + $0x1a0] sm:$0xff] %vm1683, %v2365
    %2441 = vst.msk [vmem:[%s7 + $0x1a8] sm:$0xff] %vm1683, %v2367
    %2442 = vst.msk [vmem:[%s7 + $0x1b0] sm:$0xff] %vm1683, %v2369
    %2443 = vst.msk [vmem:[%s7 + $0x1b8] sm:$0xff] %vm1683, %v2371
    %2444 = vst.msk [vmem:[%s7 + $0x1c0] sm:$0xff] %vm1683, %v2373
    %2445 = vst.msk [vmem:[%s7 + $0x1c8] sm:$0xff] %vm1683, %v2375
    %2446 = vst.msk [vmem:[%s7 + $0x1d0] sm:$0xff] %vm1683, %v2377
    %2447 = vst.msk [vmem:[%s7 + $0x1d8] sm:$0xff] %vm1683, %v2379
    %2448 = vst.msk [vmem:[%s7 + $0x1e0] sm:$0xff] %vm1683, %v2381
    %2449 = vst.msk [vmem:[%s7 + $0x1e8] sm:$0xff] %vm1683, %v2383
    %2450 = vst.msk [vmem:[%s7 + $0x1f0] sm:$0xff] %vm1683, %v2385
    %2451 = vst.msk [vmem:[%s7 + $0x1f8] sm:$0xff] %vm1683, %v2387
    // Predicated region
    $region34: #{tpu_custom_call.1} parent=1 // pred_check
      _
    $region35: #{tpu_custom_call.1} parent=1 // pred_check_branch
      %2453 = sbr.rel (0) target = $region37
    $region36: #{tpu_custom_call.1} parent=1 // pred_region
      _
    $region37: #{tpu_custom_call.1} parent=1 // pred_fallthru
      _
    // Predicated region
    $region38: #{tpu_custom_call.1} parent=1 // pred_check
      _
    $region39: #{tpu_custom_call.1} parent=1 // pred_check_branch
      %2455 = sbr.rel (0) target = $region41
    $region40: #{tpu_custom_call.1} parent=1 // pred_region
      _
    $region41: #{tpu_custom_call.1} parent=1 // pred_fallthru
      _
    %2456 = vsyncpa [#allocation3], 1

</llo_original>
